<compile_context>
chip_gen: v5e
topology: v5e:2x2
jax: 0.10.0
libtpu: 0.0.40
codegen_flags: <defaults>
</compile_context>

<pallas_src>
import jax
import jax.numpy as jnp
from jax import lax
from jax.experimental import pallas as pl
from jax.experimental.pallas import tpu as pltpu


def _pick_row_tile(seq_len: int) -> int:
    """Largest sublane-aligned tile that divides the sequence length."""
    for cand in (256, 128, 64, 32, 16, 8):
        if seq_len % cand == 0:
            return cand
    # TODO(synk): pad ragged sequence lengths (not a multiple of 8).
    raise NotImplementedError("seq_len must be a multiple of 8")


def _make_kernel(ts, n_seq_tiles, type_vocab, vocab_size, eps):
    unroll = ts <= 32  # fully unroll DMA loops only for small tiles

    def kernel(ids_smem,     # (N,)   int32, scalar-prefetch (SMEM)
               tok_ref,      # (TS,1) int32, VMEM tile of flattened token_type_ids
               word_hbm,     # (V,H)  f32, HBM (memory_space=pl.ANY)
               pos_ref,      # (TS,H) f32, VMEM tile: the positions of this seq tile
               tok_tab_ref,  # (T,H)  f32, VMEM resident
               gamma_ref,    # (1,H)  f32
               beta_ref,     # (1,H)  f32
               out_ref,      # (TS,H) f32 (batch dim squeezed by BlockSpec)
               wbuf,         # (2*TS,H) f32 scratch: double-buffered gathered rows
               sems):        # (2*TS,)  DMA semaphores, one per gathered row
        b = pl.program_id(0)
        s = pl.program_id(1)
        slot = s % 2

        def issue_gathers(tile_idx, dst_slot):
            """Start one HBM->VMEM row DMA per token of seq tile `tile_idx`."""
            row0 = (b * n_seq_tiles + tile_idx) * ts   # start row in flat ids
            base = dst_slot * ts                       # start row in wbuf slot

            def body(r, carry):
                idx = ids_smem[row0 + r]
                # Clamp so a bad id can never trigger an OOB HBM DMA
                # (PyTorch would raise; here we clamp explicitly).
                idx = jnp.clip(idx, 0, vocab_size - 1)
                pltpu.make_async_copy(word_hbm.at[pl.ds(idx, 1)],
                                      wbuf.at[pl.ds(base + r, 1)],
                                      sems.at[base + r]).start()
                return carry

            lax.fori_loop(0, ts, body, 0, unroll=unroll)

        # 1) First seq tile of this batch row: nothing was prefetched yet.
        @pl.when(s == 0)
        def _():
            issue_gathers(0, 0)

        # 2) Prefetch the NEXT seq tile's word rows into the other slot; the
        #    DMAs overlap with this tile's LayerNorm + output writeback.
        @pl.when(s + 1 < n_seq_tiles)
        def _():
            issue_gathers(s + 1, (s + 1) % 2)

        # 3) VPU work while the gather is in flight: position embedding came
        #    in via its BlockSpec; token-type is a tiny select over T rows.
        tok = tok_ref[...]                    # (TS,1) int32
        tok_tab = tok_tab_ref[...]            # (T,H)
        acc = pos_ref[...]                    # (TS,H)
        for t in range(type_vocab):
            acc = acc + jnp.where(tok == t, 1.0, 0.0) * tok_tab[t:t + 1, :]

        # 4) Wait for this tile's gathered rows (issued last step, or above).
        base = slot * ts

        def wait_body(r, carry):
            pltpu.make_async_copy(word_hbm.at[pl.ds(0, 1)],
                                  wbuf.at[pl.ds(base + r, 1)],
                                  sems.at[base + r]).wait()
            return carry

        lax.fori_loop(0, ts, wait_body, 0, unroll=unroll)

        word = wbuf[pl.ds(pl.multiple_of(base, ts), ts), :]
        emb = acc + word

        # 5) LayerNorm over the hidden dim (rsqrt -> EUP slot, ~free).
        mean = jnp.mean(emb, axis=-1, keepdims=True)
        centered = emb - mean
        var = jnp.mean(centered * centered, axis=-1, keepdims=True)
        normed = centered * lax.rsqrt(var + eps)
        out = normed * gamma_ref[...] + beta_ref[...]

        # Dropout is identity in eval mode.
        # TODO(synk): training-mode dropout (pltpu.prng_random_bits mask).
        out_ref[...] = out.astype(out_ref.dtype)

    return kernel


def bert_graph_embeddings(input_ids, token_type_ids, word_table, pos_table,
                          tok_table, gamma, beta, eps, position_ids=None,
                          row_tile=None):
    B, S = input_ids.shape
    V, H = word_table.shape
    P = pos_table.shape[0]
    T = tok_table.shape[0]
    assert S <= P, "sequence length exceeds max_position_embeddings"

    if token_type_ids is None:
        token_type_ids = jnp.zeros((B, S), dtype=jnp.int32)
    if position_ids is not None:
        # TODO(synk): arbitrary user-supplied position_ids; the module default
        # (arange(S) broadcast over batch) is implemented structurally via the
        # pos_table BlockSpec index_map below.
        raise NotImplementedError("custom position_ids not supported")

    ts = row_tile if row_tile is not None else _pick_row_tile(S)
    assert S % ts == 0 and ts % 8 == 0, "row tile must be sublane-aligned and divide S"
    n_seq_tiles = S // ts
    N = B * S

    ids_flat = input_ids.reshape(N).astype(jnp.int32)
    tok2 = token_type_ids.reshape(N, 1).astype(jnp.int32)
    gamma2 = gamma.reshape(1, H).astype(jnp.float32)
    beta2 = beta.reshape(1, H).astype(jnp.float32)

    kernel = _make_kernel(ts, n_seq_tiles, T, V, float(eps))

    grid_spec = pltpu.PrefetchScalarGridSpec(
        num_scalar_prefetch=1,          # input_ids -> SMEM for DMA addressing
        grid=(B, n_seq_tiles),
        in_specs=[
            # token_type ids: (TS, 1) tile of the flattened (N, 1) id array
            pl.BlockSpec((ts, 1), lambda b, s, ids: (b * n_seq_tiles + s, 0)),
            # word table stays in HBM; gathered row-by-row via manual DMA
            pl.BlockSpec(memory_space=pl.ANY),
            # position table: rows [s*ts, s*ts+ts) ARE the positions of this tile
            pl.BlockSpec((ts, H), lambda b, s, ids: (s, 0)),
            # small resident tables / affine params (same block every step)
            pl.BlockSpec((T, H), lambda b, s, ids: (0, 0)),
            pl.BlockSpec((1, H), lambda b, s, ids: (0, 0)),
            pl.BlockSpec((1, H), lambda b, s, ids: (0, 0)),
        ],
        out_specs=pl.BlockSpec((None, ts, H), lambda b, s, ids: (b, s, 0)),
        scratch_shapes=[
            pltpu.VMEM((2 * ts, H), jnp.float32),   # double-buffered gathered rows
            pltpu.SemaphoreType.DMA((2 * ts,)),     # one DMA sem per gathered row
        ],
    )

    out = pl.pallas_call(
        kernel,
        out_shape=jax.ShapeDtypeStruct((B, S, H), jnp.float32),
        grid_spec=grid_spec,
        compiler_params=pltpu.CompilerParams(
            # seq axis must run in order (cross-step gather prefetch);
            # batch axis splits across TensorCores on v7x.
            dimension_semantics=("parallel", "arbitrary"),
            vmem_limit_bytes=32 * 1024 * 1024,
        ),
    )(ids_flat, tok2,
      word_table.astype(jnp.float32),
      pos_table.astype(jnp.float32),
      tok_table.astype(jnp.float32),
      gamma2, beta2)

    return out


if __name__ == "__main__":
    # Small config consistent with the module's __init__.  S=16 with an 8-row
    # tile forces 2 seq tiles per batch row so the cross-step gather prefetch
    # path is exercised.
    B, S, H = 2, 16, 32
    vocab_size = 32
    max_position_embeddings = 16
    type_vocab_size = 2
    layer_norm_eps = 1e-12

    key = jax.random.PRNGKey(0)
    k_w, k_p, k_t, k_g, k_b, k_ids, k_tok = jax.random.split(key, 7)

    # Deterministic parameter init (BERT-style N(0, 0.02)); padding_idx=0 row zeroed.
    word_table = 0.02 * jax.random.normal(k_w, (vocab_size, H), dtype=jnp.float32)
    word_table = word_table.at[0].set(0.0)   # nn.Embedding(padding_idx=0)
    pos_table = 0.02 * jax.random.normal(k_p, (max_position_embeddings, H), dtype=jnp.float32)
    tok_table = 0.02 * jax.random.normal(k_t, (type_vocab_size, H), dtype=jnp.float32)
    gamma = jnp.ones((H,), dtype=jnp.float32) + 0.01 * jax.random.normal(k_g, (H,), dtype=jnp.float32)
    beta = 0.01 * jax.random.normal(k_b, (H,), dtype=jnp.float32)

    input_ids = jax.random.randint(k_ids, (B, S), 0, vocab_size, dtype=jnp.int32)
    token_type_ids = jax.random.randint(k_tok, (B, S), 0, type_vocab_size, dtype=jnp.int32)

    out = bert_graph_embeddings(input_ids, token_type_ids, word_table, pos_table,
                                tok_table, gamma, beta, layer_norm_eps, row_tile=8)
    out = jax.block_until_ready(out)

    # Pure-JAX reference (position_ids default = arange broadcast over batch).
    position_ids = jnp.broadcast_to(jnp.arange(S, dtype=jnp.int32)[None, :], (B, S))
    ref = word_table[input_ids] + pos_table[position_ids] + tok_table[token_type_ids]
    mean = ref.mean(-1, keepdims=True)
    var = ((ref - mean) ** 2).mean(-1, keepdims=True)
    ref = (ref - mean) / jnp.sqrt(var + layer_norm_eps) * gamma + beta

    assert out.shape == (B, S, H)
    assert jnp.allclose(out, ref, atol=1e-4, rtol=1e-4)
    print("KERNEL_OK")
</pallas_src>

<mosaic_0001>
module attributes {stable_mosaic.version = 11 : i64} {
  func.func @kernel(%arg0: i32, %arg1: i32, %arg2: memref<32xi32, #tpu.memory_space<smem>>, %arg3: memref<8x1xi32, #tpu.memory_space<vmem>>, %arg4: memref<32x32xf32, #tpu.memory_space<any>>, %arg5: memref<8x32xf32, #tpu.memory_space<vmem>>, %arg6: memref<2x32xf32, #tpu.memory_space<vmem>>, %arg7: memref<1x32xf32, #tpu.memory_space<vmem>>, %arg8: memref<1x32xf32, #tpu.memory_space<vmem>>, %arg9: memref<1x8x32xf32, #tpu.memory_space<vmem>>, %arg10: memref<16x32xf32, #tpu.memory_space<vmem>>, %arg11: memref<16x!tpu.dma_semaphore, #tpu.memory_space<semaphore_mem>>) attributes {dimension_semantics = [#tpu.dimension_semantics<parallel>, #tpu.dimension_semantics<arbitrary>], iteration_bounds = array<i64: 2, 2>, scalar_prefetch = 1 : i64, scratch_operands = 2 : i64, tpu.core_type = #tpu.core_type<tc>, window_params = [{transform_indices = @transform_0, window_bounds = array<i64: 8, 1>}, {}, {transform_indices = @transform_2, window_bounds = array<i64: 8, 32>}, {pipeline_mode = #tpu.pipeline_mode<synchronous>, transform_indices = @transform_3, window_bounds = array<i64: 2, 32>}, {pipeline_mode = #tpu.pipeline_mode<synchronous>, transform_indices = @transform_4, window_bounds = array<i64: 1, 32>}, {pipeline_mode = #tpu.pipeline_mode<synchronous>, transform_indices = @transform_5, window_bounds = array<i64: 1, 32>}, {transform_indices = @transform_6, window_bounds = array<i64: 1, 8, 32>}]} {
    %c2_i32 = arith.constant 2 : i32
    %c0_i32 = arith.constant 0 : i32
    %0 = arith.cmpi eq, %c2_i32, %c0_i32 : i32
    %c1_i32 = arith.constant 1 : i32
    %1 = arith.select %0, %c1_i32, %c2_i32 : i32
    %2 = arith.remsi %arg1, %1 : i32
    %c0_i32_0 = arith.constant 0 : i32
    %3 = arith.cmpi ne, %2, %c0_i32_0 : i32
    %c0_i32_1 = arith.constant 0 : i32
    %4 = arith.cmpi slt, %2, %c0_i32_1 : i32
    %c0_i32_2 = arith.constant 0 : i32
    %5 = arith.cmpi slt, %1, %c0_i32_2 : i32
    %6 = arith.xori %4, %5 : i1
    %7 = arith.andi %6, %3 : i1
    %8 = arith.addi %2, %1 : i32
    %9 = arith.select %7, %8, %2 : i32
    %c0_i32_3 = arith.constant 0 : i32
    %10 = arith.cmpi eq, %arg1, %c0_i32_3 : i32
    %11 = arith.extui %10 : i1 to i32
    %c0_i32_4 = arith.constant 0 : i32
    %12 = arith.cmpi ne, %11, %c0_i32_4 : i32
    scf.if %12 {
      %c2_i32_59 = arith.constant 2 : i32
      %118 = arith.muli %arg0, %c2_i32_59 : i32
      %c0_i32_60 = arith.constant 0 : i32
      %119 = arith.addi %118, %c0_i32_60 : i32
      %c8_i32_61 = arith.constant 8 : i32
      %120 = arith.muli %119, %c8_i32_61 : i32
      %c0_i32_62 = arith.constant 0 : i32
      %121 = arith.addi %120, %c0_i32_62 : i32
      %122 = arith.index_cast %121 : i32 to index
      %123 = memref.load %arg2[%122] : memref<32xi32, #tpu.memory_space<smem>>
      %c0_i32_63 = arith.constant 0 : i32
      %c31_i32 = arith.constant 31 : i32
      %124 = arith.maxsi %c0_i32_63, %123 : i32
      %125 = arith.minsi %c31_i32, %124 : i32
      %c0_i32_64 = arith.constant 0 : i32
      %126 = arith.addi %c0_i32_64, %c0_i32_62 : i32
      %c0_i32_65 = arith.constant 0 : i32
      %127 = arith.addi %c0_i32_65, %c0_i32_62 : i32
      %c0_i32_66 = arith.constant 0 : i32
      %128 = tpu.memref_slice %arg4[%125, %c0_i32_66] : memref<32x32xf32, #tpu.memory_space<any>> -> memref<1x32xf32, #tpu.memory_space<any>>
      %c0_i32_67 = arith.constant 0 : i32
      %129 = tpu.memref_slice %arg10[%126, %c0_i32_67] : memref<16x32xf32, #tpu.memory_space<vmem>> -> memref<1x32xf32, #tpu.memory_space<vmem>>
      %130 = tpu.memref_slice %arg11[%127] : memref<16x!tpu.dma_semaphore, #tpu.memory_space<semaphore_mem>> -> memref<1x!tpu.dma_semaphore, #tpu.memory_space<semaphore_mem>>
      %131 = tpu.memref_squeeze %130 : memref<1x!tpu.dma_semaphore, #tpu.memory_space<semaphore_mem>> -> memref<!tpu.dma_semaphore, #tpu.memory_space<semaphore_mem>>
      tpu.enqueue_dma source(%128 : memref<1x32xf32, #tpu.memory_space<any>>) target(%129 : memref<1x32xf32, #tpu.memory_space<vmem>>) target_semaphore(%131 : memref<!tpu.dma_semaphore, #tpu.memory_space<semaphore_mem>>)
      %c1_i32_68 = arith.constant 1 : i32
      %132 = arith.addi %120, %c1_i32_68 : i32
      %133 = arith.index_cast %132 : i32 to index
      %134 = memref.load %arg2[%133] : memref<32xi32, #tpu.memory_space<smem>>
      %c0_i32_69 = arith.constant 0 : i32
      %c31_i32_70 = arith.constant 31 : i32
      %135 = arith.maxsi %c0_i32_69, %134 : i32
      %136 = arith.minsi %c31_i32_70, %135 : i32
      %c0_i32_71 = arith.constant 0 : i32
      %137 = arith.addi %c0_i32_71, %c1_i32_68 : i32
      %c0_i32_72 = arith.constant 0 : i32
      %138 = arith.addi %c0_i32_72, %c1_i32_68 : i32
      %c0_i32_73 = arith.constant 0 : i32
      %139 = tpu.memref_slice %arg4[%136, %c0_i32_73] : memref<32x32xf32, #tpu.memory_space<any>> -> memref<1x32xf32, #tpu.memory_space<any>>
      %c0_i32_74 = arith.constant 0 : i32
      %140 = tpu.memref_slice %arg10[%137, %c0_i32_74] : memref<16x32xf32, #tpu.memory_space<vmem>> -> memref<1x32xf32, #tpu.memory_space<vmem>>
      %141 = tpu.memref_slice %arg11[%138] : memref<16x!tpu.dma_semaphore, #tpu.memory_space<semaphore_mem>> -> memref<1x!tpu.dma_semaphore, #tpu.memory_space<semaphore_mem>>
      %142 = tpu.memref_squeeze %141 : memref<1x!tpu.dma_semaphore, #tpu.memory_space<semaphore_mem>> -> memref<!tpu.dma_semaphore, #tpu.memory_space<semaphore_mem>>
      tpu.enqueue_dma source(%139 : memref<1x32xf32, #tpu.memory_space<any>>) target(%140 : memref<1x32xf32, #tpu.memory_space<vmem>>) target_semaphore(%142 : memref<!tpu.dma_semaphore, #tpu.memory_space<semaphore_mem>>)
      %c2_i32_75 = arith.constant 2 : i32
      %143 = arith.addi %120, %c2_i32_75 : i32
      %144 = arith.index_cast %143 : i32 to index
      %145 = memref.load %arg2[%144] : memref<32xi32, #tpu.memory_space<smem>>
      %c0_i32_76 = arith.constant 0 : i32
      %c31_i32_77 = arith.constant 31 : i32
      %146 = arith.maxsi %c0_i32_76, %145 : i32
      %147 = arith.minsi %c31_i32_77, %146 : i32
      %c0_i32_78 = arith.constant 0 : i32
      %148 = arith.addi %c0_i32_78, %c2_i32_75 : i32
      %c0_i32_79 = arith.constant 0 : i32
      %149 = arith.addi %c0_i32_79, %c2_i32_75 : i32
      %c0_i32_80 = arith.constant 0 : i32
      %150 = tpu.memref_slice %arg4[%147, %c0_i32_80] : memref<32x32xf32, #tpu.memory_space<any>> -> memref<1x32xf32, #tpu.memory_space<any>>
      %c0_i32_81 = arith.constant 0 : i32
      %151 = tpu.memref_slice %arg10[%148, %c0_i32_81] : memref<16x32xf32, #tpu.memory_space<vmem>> -> memref<1x32xf32, #tpu.memory_space<vmem>>
      %152 = tpu.memref_slice %arg11[%149] : memref<16x!tpu.dma_semaphore, #tpu.memory_space<semaphore_mem>> -> memref<1x!tpu.dma_semaphore, #tpu.memory_space<semaphore_mem>>
      %153 = tpu.memref_squeeze %152 : memref<1x!tpu.dma_semaphore, #tpu.memory_space<semaphore_mem>> -> memref<!tpu.dma_semaphore, #tpu.memory_space<semaphore_mem>>
      tpu.enqueue_dma source(%150 : memref<1x32xf32, #tpu.memory_space<any>>) target(%151 : memref<1x32xf32, #tpu.memory_space<vmem>>) target_semaphore(%153 : memref<!tpu.dma_semaphore, #tpu.memory_space<semaphore_mem>>)
      %c3_i32_82 = arith.constant 3 : i32
      %154 = arith.addi %120, %c3_i32_82 : i32
      %155 = arith.index_cast %154 : i32 to index
      %156 = memref.load %arg2[%155] : memref<32xi32, #tpu.memory_space<smem>>
      %c0_i32_83 = arith.constant 0 : i32
      %c31_i32_84 = arith.constant 31 : i32
      %157 = arith.maxsi %c0_i32_83, %156 : i32
      %158 = arith.minsi %c31_i32_84, %157 : i32
      %c0_i32_85 = arith.constant 0 : i32
      %159 = arith.addi %c0_i32_85, %c3_i32_82 : i32
      %c0_i32_86 = arith.constant 0 : i32
      %160 = arith.addi %c0_i32_86, %c3_i32_82 : i32
      %c0_i32_87 = arith.constant 0 : i32
      %161 = tpu.memref_slice %arg4[%158, %c0_i32_87] : memref<32x32xf32, #tpu.memory_space<any>> -> memref<1x32xf32, #tpu.memory_space<any>>
      %c0_i32_88 = arith.constant 0 : i32
      %162 = tpu.memref_slice %arg10[%159, %c0_i32_88] : memref<16x32xf32, #tpu.memory_space<vmem>> -> memref<1x32xf32, #tpu.memory_space<vmem>>
      %163 = tpu.memref_slice %arg11[%160] : memref<16x!tpu.dma_semaphore, #tpu.memory_space<semaphore_mem>> -> memref<1x!tpu.dma_semaphore, #tpu.memory_space<semaphore_mem>>
      %164 = tpu.memref_squeeze %163 : memref<1x!tpu.dma_semaphore, #tpu.memory_space<semaphore_mem>> -> memref<!tpu.dma_semaphore, #tpu.memory_space<semaphore_mem>>
      tpu.enqueue_dma source(%161 : memref<1x32xf32, #tpu.memory_space<any>>) target(%162 : memref<1x32xf32, #tpu.memory_space<vmem>>) target_semaphore(%164 : memref<!tpu.dma_semaphore, #tpu.memory_space<semaphore_mem>>)
      %c4_i32_89 = arith.constant 4 : i32
      %165 = arith.addi %120, %c4_i32_89 : i32
      %166 = arith.index_cast %165 : i32 to index
      %167 = memref.load %arg2[%166] : memref<32xi32, #tpu.memory_space<smem>>
      %c0_i32_90 = arith.constant 0 : i32
      %c31_i32_91 = arith.constant 31 : i32
      %168 = arith.maxsi %c0_i32_90, %167 : i32
      %169 = arith.minsi %c31_i32_91, %168 : i32
      %c0_i32_92 = arith.constant 0 : i32
      %170 = arith.addi %c0_i32_92, %c4_i32_89 : i32
      %c0_i32_93 = arith.constant 0 : i32
      %171 = arith.addi %c0_i32_93, %c4_i32_89 : i32
      %c0_i32_94 = arith.constant 0 : i32
      %172 = tpu.memref_slice %arg4[%169, %c0_i32_94] : memref<32x32xf32, #tpu.memory_space<any>> -> memref<1x32xf32, #tpu.memory_space<any>>
      %c0_i32_95 = arith.constant 0 : i32
      %173 = tpu.memref_slice %arg10[%170, %c0_i32_95] : memref<16x32xf32, #tpu.memory_space<vmem>> -> memref<1x32xf32, #tpu.memory_space<vmem>>
      %174 = tpu.memref_slice %arg11[%171] : memref<16x!tpu.dma_semaphore, #tpu.memory_space<semaphore_mem>> -> memref<1x!tpu.dma_semaphore, #tpu.memory_space<semaphore_mem>>
      %175 = tpu.memref_squeeze %174 : memref<1x!tpu.dma_semaphore, #tpu.memory_space<semaphore_mem>> -> memref<!tpu.dma_semaphore, #tpu.memory_space<semaphore_mem>>
      tpu.enqueue_dma source(%172 : memref<1x32xf32, #tpu.memory_space<any>>) target(%173 : memref<1x32xf32, #tpu.memory_space<vmem>>) target_semaphore(%175 : memref<!tpu.dma_semaphore, #tpu.memory_space<semaphore_mem>>)
      %c5_i32_96 = arith.constant 5 : i32
      %176 = arith.addi %120, %c5_i32_96 : i32
      %177 = arith.index_cast %176 : i32 to index
      %178 = memref.load %arg2[%177] : memref<32xi32, #tpu.memory_space<smem>>
      %c0_i32_97 = arith.constant 0 : i32
      %c31_i32_98 = arith.constant 31 : i32
      %179 = arith.maxsi %c0_i32_97, %178 : i32
      %180 = arith.minsi %c31_i32_98, %179 : i32
      %c0_i32_99 = arith.constant 0 : i32
      %181 = arith.addi %c0_i32_99, %c5_i32_96 : i32
      %c0_i32_100 = arith.constant 0 : i32
      %182 = arith.addi %c0_i32_100, %c5_i32_96 : i32
      %c0_i32_101 = arith.constant 0 : i32
      %183 = tpu.memref_slice %arg4[%180, %c0_i32_101] : memref<32x32xf32, #tpu.memory_space<any>> -> memref<1x32xf32, #tpu.memory_space<any>>
      %c0_i32_102 = arith.constant 0 : i32
      %184 = tpu.memref_slice %arg10[%181, %c0_i32_102] : memref<16x32xf32, #tpu.memory_space<vmem>> -> memref<1x32xf32, #tpu.memory_space<vmem>>
      %185 = tpu.memref_slice %arg11[%182] : memref<16x!tpu.dma_semaphore, #tpu.memory_space<semaphore_mem>> -> memref<1x!tpu.dma_semaphore, #tpu.memory_space<semaphore_mem>>
      %186 = tpu.memref_squeeze %185 : memref<1x!tpu.dma_semaphore, #tpu.memory_space<semaphore_mem>> -> memref<!tpu.dma_semaphore, #tpu.memory_space<semaphore_mem>>
      tpu.enqueue_dma source(%183 : memref<1x32xf32, #tpu.memory_space<any>>) target(%184 : memref<1x32xf32, #tpu.memory_space<vmem>>) target_semaphore(%186 : memref<!tpu.dma_semaphore, #tpu.memory_space<semaphore_mem>>)
      %c6_i32_103 = arith.constant 6 : i32
      %187 = arith.addi %120, %c6_i32_103 : i32
      %188 = arith.index_cast %187 : i32 to index
      %189 = memref.load %arg2[%188] : memref<32xi32, #tpu.memory_space<smem>>
      %c0_i32_104 = arith.constant 0 : i32
      %c31_i32_105 = arith.constant 31 : i32
      %190 = arith.maxsi %c0_i32_104, %189 : i32
      %191 = arith.minsi %c31_i32_105, %190 : i32
      %c0_i32_106 = arith.constant 0 : i32
      %192 = arith.addi %c0_i32_106, %c6_i32_103 : i32
      %c0_i32_107 = arith.constant 0 : i32
      %193 = arith.addi %c0_i32_107, %c6_i32_103 : i32
      %c0_i32_108 = arith.constant 0 : i32
      %194 = tpu.memref_slice %arg4[%191, %c0_i32_108] : memref<32x32xf32, #tpu.memory_space<any>> -> memref<1x32xf32, #tpu.memory_space<any>>
      %c0_i32_109 = arith.constant 0 : i32
      %195 = tpu.memref_slice %arg10[%192, %c0_i32_109] : memref<16x32xf32, #tpu.memory_space<vmem>> -> memref<1x32xf32, #tpu.memory_space<vmem>>
      %196 = tpu.memref_slice %arg11[%193] : memref<16x!tpu.dma_semaphore, #tpu.memory_space<semaphore_mem>> -> memref<1x!tpu.dma_semaphore, #tpu.memory_space<semaphore_mem>>
      %197 = tpu.memref_squeeze %196 : memref<1x!tpu.dma_semaphore, #tpu.memory_space<semaphore_mem>> -> memref<!tpu.dma_semaphore, #tpu.memory_space<semaphore_mem>>
      tpu.enqueue_dma source(%194 : memref<1x32xf32, #tpu.memory_space<any>>) target(%195 : memref<1x32xf32, #tpu.memory_space<vmem>>) target_semaphore(%197 : memref<!tpu.dma_semaphore, #tpu.memory_space<semaphore_mem>>)
      %c7_i32_110 = arith.constant 7 : i32
      %198 = arith.addi %120, %c7_i32_110 : i32
      %199 = arith.index_cast %198 : i32 to index
      %200 = memref.load %arg2[%199] : memref<32xi32, #tpu.memory_space<smem>>
      %c0_i32_111 = arith.constant 0 : i32
      %c31_i32_112 = arith.constant 31 : i32
      %201 = arith.maxsi %c0_i32_111, %200 : i32
      %202 = arith.minsi %c31_i32_112, %201 : i32
      %c0_i32_113 = arith.constant 0 : i32
      %203 = arith.addi %c0_i32_113, %c7_i32_110 : i32
      %c0_i32_114 = arith.constant 0 : i32
      %204 = arith.addi %c0_i32_114, %c7_i32_110 : i32
      %c0_i32_115 = arith.constant 0 : i32
      %205 = tpu.memref_slice %arg4[%202, %c0_i32_115] : memref<32x32xf32, #tpu.memory_space<any>> -> memref<1x32xf32, #tpu.memory_space<any>>
      %c0_i32_116 = arith.constant 0 : i32
      %206 = tpu.memref_slice %arg10[%203, %c0_i32_116] : memref<16x32xf32, #tpu.memory_space<vmem>> -> memref<1x32xf32, #tpu.memory_space<vmem>>
      %207 = tpu.memref_slice %arg11[%204] : memref<16x!tpu.dma_semaphore, #tpu.memory_space<semaphore_mem>> -> memref<1x!tpu.dma_semaphore, #tpu.memory_space<semaphore_mem>>
      %208 = tpu.memref_squeeze %207 : memref<1x!tpu.dma_semaphore, #tpu.memory_space<semaphore_mem>> -> memref<!tpu.dma_semaphore, #tpu.memory_space<semaphore_mem>>
      tpu.enqueue_dma source(%205 : memref<1x32xf32, #tpu.memory_space<any>>) target(%206 : memref<1x32xf32, #tpu.memory_space<vmem>>) target_semaphore(%208 : memref<!tpu.dma_semaphore, #tpu.memory_space<semaphore_mem>>)
      %c8_i32_117 = arith.constant 8 : i32
    } else {
    }
    %c1_i32_5 = arith.constant 1 : i32
    %13 = arith.addi %arg1, %c1_i32_5 : i32
    %c2_i32_6 = arith.constant 2 : i32
    %14 = arith.cmpi slt, %13, %c2_i32_6 : i32
    %15 = arith.extui %14 : i1 to i32
    %c0_i32_7 = arith.constant 0 : i32
    %16 = arith.cmpi ne, %15, %c0_i32_7 : i32
    scf.if %16 {
      %c1_i32_59 = arith.constant 1 : i32
      %118 = arith.addi %arg1, %c1_i32_59 : i32
      %c1_i32_60 = arith.constant 1 : i32
      %119 = arith.addi %arg1, %c1_i32_60 : i32
      %c2_i32_61 = arith.constant 2 : i32
      %c0_i32_62 = arith.constant 0 : i32
      %120 = arith.cmpi eq, %c2_i32_61, %c0_i32_62 : i32
      %c1_i32_63 = arith.constant 1 : i32
      %121 = arith.select %120, %c1_i32_63, %c2_i32_61 : i32
      %122 = arith.remsi %119, %121 : i32
      %c0_i32_64 = arith.constant 0 : i32
      %123 = arith.cmpi ne, %122, %c0_i32_64 : i32
      %c0_i32_65 = arith.constant 0 : i32
      %124 = arith.cmpi slt, %122, %c0_i32_65 : i32
      %c0_i32_66 = arith.constant 0 : i32
      %125 = arith.cmpi slt, %121, %c0_i32_66 : i32
      %126 = arith.xori %124, %125 : i1
      %127 = arith.andi %126, %123 : i1
      %128 = arith.addi %122, %121 : i32
      %129 = arith.select %127, %128, %122 : i32
      %c2_i32_67 = arith.constant 2 : i32
      %130 = arith.muli %arg0, %c2_i32_67 : i32
      %131 = arith.addi %130, %118 : i32
      %c8_i32_68 = arith.constant 8 : i32
      %132 = arith.muli %131, %c8_i32_68 : i32
      %c8_i32_69 = arith.constant 8 : i32
      %133 = arith.muli %129, %c8_i32_69 : i32
      %c0_i32_70 = arith.constant 0 : i32
      %134 = arith.addi %132, %c0_i32_70 : i32
      %135 = arith.index_cast %134 : i32 to index
      %136 = memref.load %arg2[%135] : memref<32xi32, #tpu.memory_space<smem>>
      %c0_i32_71 = arith.constant 0 : i32
      %c31_i32 = arith.constant 31 : i32
      %137 = arith.maxsi %c0_i32_71, %136 : i32
      %138 = arith.minsi %c31_i32, %137 : i32
      %139 = arith.addi %133, %c0_i32_70 : i32
      %140 = arith.addi %133, %c0_i32_70 : i32
      %c0_i32_72 = arith.constant 0 : i32
      %141 = tpu.memref_slice %arg4[%138, %c0_i32_72] : memref<32x32xf32, #tpu.memory_space<any>> -> memref<1x32xf32, #tpu.memory_space<any>>
      %c0_i32_73 = arith.constant 0 : i32
      %142 = tpu.memref_slice %arg10[%139, %c0_i32_73] : memref<16x32xf32, #tpu.memory_space<vmem>> -> memref<1x32xf32, #tpu.memory_space<vmem>>
      %143 = tpu.memref_slice %arg11[%140] : memref<16x!tpu.dma_semaphore, #tpu.memory_space<semaphore_mem>> -> memref<1x!tpu.dma_semaphore, #tpu.memory_space<semaphore_mem>>
      %144 = tpu.memref_squeeze %143 : memref<1x!tpu.dma_semaphore, #tpu.memory_space<semaphore_mem>> -> memref<!tpu.dma_semaphore, #tpu.memory_space<semaphore_mem>>
      tpu.enqueue_dma source(%141 : memref<1x32xf32, #tpu.memory_space<any>>) target(%142 : memref<1x32xf32, #tpu.memory_space<vmem>>) target_semaphore(%144 : memref<!tpu.dma_semaphore, #tpu.memory_space<semaphore_mem>>)
      %c1_i32_74 = arith.constant 1 : i32
      %145 = arith.addi %132, %c1_i32_74 : i32
      %146 = arith.index_cast %145 : i32 to index
      %147 = memref.load %arg2[%146] : memref<32xi32, #tpu.memory_space<smem>>
      %c0_i32_75 = arith.constant 0 : i32
      %c31_i32_76 = arith.constant 31 : i32
      %148 = arith.maxsi %c0_i32_75, %147 : i32
      %149 = arith.minsi %c31_i32_76, %148 : i32
      %150 = arith.addi %133, %c1_i32_74 : i32
      %151 = arith.addi %133, %c1_i32_74 : i32
      %c0_i32_77 = arith.constant 0 : i32
      %152 = tpu.memref_slice %arg4[%149, %c0_i32_77] : memref<32x32xf32, #tpu.memory_space<any>> -> memref<1x32xf32, #tpu.memory_space<any>>
      %c0_i32_78 = arith.constant 0 : i32
      %153 = tpu.memref_slice %arg10[%150, %c0_i32_78] : memref<16x32xf32, #tpu.memory_space<vmem>> -> memref<1x32xf32, #tpu.memory_space<vmem>>
      %154 = tpu.memref_slice %arg11[%151] : memref<16x!tpu.dma_semaphore, #tpu.memory_space<semaphore_mem>> -> memref<1x!tpu.dma_semaphore, #tpu.memory_space<semaphore_mem>>
      %155 = tpu.memref_squeeze %154 : memref<1x!tpu.dma_semaphore, #tpu.memory_space<semaphore_mem>> -> memref<!tpu.dma_semaphore, #tpu.memory_space<semaphore_mem>>
      tpu.enqueue_dma source(%152 : memref<1x32xf32, #tpu.memory_space<any>>) target(%153 : memref<1x32xf32, #tpu.memory_space<vmem>>) target_semaphore(%155 : memref<!tpu.dma_semaphore, #tpu.memory_space<semaphore_mem>>)
      %c2_i32_79 = arith.constant 2 : i32
      %156 = arith.addi %132, %c2_i32_79 : i32
      %157 = arith.index_cast %156 : i32 to index
      %158 = memref.load %arg2[%157] : memref<32xi32, #tpu.memory_space<smem>>
      %c0_i32_80 = arith.constant 0 : i32
      %c31_i32_81 = arith.constant 31 : i32
      %159 = arith.maxsi %c0_i32_80, %158 : i32
      %160 = arith.minsi %c31_i32_81, %159 : i32
      %161 = arith.addi %133, %c2_i32_79 : i32
      %162 = arith.addi %133, %c2_i32_79 : i32
      %c0_i32_82 = arith.constant 0 : i32
      %163 = tpu.memref_slice %arg4[%160, %c0_i32_82] : memref<32x32xf32, #tpu.memory_space<any>> -> memref<1x32xf32, #tpu.memory_space<any>>
      %c0_i32_83 = arith.constant 0 : i32
      %164 = tpu.memref_slice %arg10[%161, %c0_i32_83] : memref<16x32xf32, #tpu.memory_space<vmem>> -> memref<1x32xf32, #tpu.memory_space<vmem>>
      %165 = tpu.memref_slice %arg11[%162] : memref<16x!tpu.dma_semaphore, #tpu.memory_space<semaphore_mem>> -> memref<1x!tpu.dma_semaphore, #tpu.memory_space<semaphore_mem>>
      %166 = tpu.memref_squeeze %165 : memref<1x!tpu.dma_semaphore, #tpu.memory_space<semaphore_mem>> -> memref<!tpu.dma_semaphore, #tpu.memory_space<semaphore_mem>>
      tpu.enqueue_dma source(%163 : memref<1x32xf32, #tpu.memory_space<any>>) target(%164 : memref<1x32xf32, #tpu.memory_space<vmem>>) target_semaphore(%166 : memref<!tpu.dma_semaphore, #tpu.memory_space<semaphore_mem>>)
      %c3_i32_84 = arith.constant 3 : i32
      %167 = arith.addi %132, %c3_i32_84 : i32
      %168 = arith.index_cast %167 : i32 to index
      %169 = memref.load %arg2[%168] : memref<32xi32, #tpu.memory_space<smem>>
      %c0_i32_85 = arith.constant 0 : i32
      %c31_i32_86 = arith.constant 31 : i32
      %170 = arith.maxsi %c0_i32_85, %169 : i32
      %171 = arith.minsi %c31_i32_86, %170 : i32
      %172 = arith.addi %133, %c3_i32_84 : i32
      %173 = arith.addi %133, %c3_i32_84 : i32
      %c0_i32_87 = arith.constant 0 : i32
      %174 = tpu.memref_slice %arg4[%171, %c0_i32_87] : memref<32x32xf32, #tpu.memory_space<any>> -> memref<1x32xf32, #tpu.memory_space<any>>
      %c0_i32_88 = arith.constant 0 : i32
      %175 = tpu.memref_slice %arg10[%172, %c0_i32_88] : memref<16x32xf32, #tpu.memory_space<vmem>> -> memref<1x32xf32, #tpu.memory_space<vmem>>
      %176 = tpu.memref_slice %arg11[%173] : memref<16x!tpu.dma_semaphore, #tpu.memory_space<semaphore_mem>> -> memref<1x!tpu.dma_semaphore, #tpu.memory_space<semaphore_mem>>
      %177 = tpu.memref_squeeze %176 : memref<1x!tpu.dma_semaphore, #tpu.memory_space<semaphore_mem>> -> memref<!tpu.dma_semaphore, #tpu.memory_space<semaphore_mem>>
      tpu.enqueue_dma source(%174 : memref<1x32xf32, #tpu.memory_space<any>>) target(%175 : memref<1x32xf32, #tpu.memory_space<vmem>>) target_semaphore(%177 : memref<!tpu.dma_semaphore, #tpu.memory_space<semaphore_mem>>)
      %c4_i32_89 = arith.constant 4 : i32
      %178 = arith.addi %132, %c4_i32_89 : i32
      %179 = arith.index_cast %178 : i32 to index
      %180 = memref.load %arg2[%179] : memref<32xi32, #tpu.memory_space<smem>>
      %c0_i32_90 = arith.constant 0 : i32
      %c31_i32_91 = arith.constant 31 : i32
      %181 = arith.maxsi %c0_i32_90, %180 : i32
      %182 = arith.minsi %c31_i32_91, %181 : i32
      %183 = arith.addi %133, %c4_i32_89 : i32
      %184 = arith.addi %133, %c4_i32_89 : i32
      %c0_i32_92 = arith.constant 0 : i32
      %185 = tpu.memref_slice %arg4[%182, %c0_i32_92] : memref<32x32xf32, #tpu.memory_space<any>> -> memref<1x32xf32, #tpu.memory_space<any>>
      %c0_i32_93 = arith.constant 0 : i32
      %186 = tpu.memref_slice %arg10[%183, %c0_i32_93] : memref<16x32xf32, #tpu.memory_space<vmem>> -> memref<1x32xf32, #tpu.memory_space<vmem>>
      %187 = tpu.memref_slice %arg11[%184] : memref<16x!tpu.dma_semaphore, #tpu.memory_space<semaphore_mem>> -> memref<1x!tpu.dma_semaphore, #tpu.memory_space<semaphore_mem>>
      %188 = tpu.memref_squeeze %187 : memref<1x!tpu.dma_semaphore, #tpu.memory_space<semaphore_mem>> -> memref<!tpu.dma_semaphore, #tpu.memory_space<semaphore_mem>>
      tpu.enqueue_dma source(%185 : memref<1x32xf32, #tpu.memory_space<any>>) target(%186 : memref<1x32xf32, #tpu.memory_space<vmem>>) target_semaphore(%188 : memref<!tpu.dma_semaphore, #tpu.memory_space<semaphore_mem>>)
      %c5_i32_94 = arith.constant 5 : i32
      %189 = arith.addi %132, %c5_i32_94 : i32
      %190 = arith.index_cast %189 : i32 to index
      %191 = memref.load %arg2[%190] : memref<32xi32, #tpu.memory_space<smem>>
      %c0_i32_95 = arith.constant 0 : i32
      %c31_i32_96 = arith.constant 31 : i32
      %192 = arith.maxsi %c0_i32_95, %191 : i32
      %193 = arith.minsi %c31_i32_96, %192 : i32
      %194 = arith.addi %133, %c5_i32_94 : i32
      %195 = arith.addi %133, %c5_i32_94 : i32
      %c0_i32_97 = arith.constant 0 : i32
      %196 = tpu.memref_slice %arg4[%193, %c0_i32_97] : memref<32x32xf32, #tpu.memory_space<any>> -> memref<1x32xf32, #tpu.memory_space<any>>
      %c0_i32_98 = arith.constant 0 : i32
      %197 = tpu.memref_slice %arg10[%194, %c0_i32_98] : memref<16x32xf32, #tpu.memory_space<vmem>> -> memref<1x32xf32, #tpu.memory_space<vmem>>
      %198 = tpu.memref_slice %arg11[%195] : memref<16x!tpu.dma_semaphore, #tpu.memory_space<semaphore_mem>> -> memref<1x!tpu.dma_semaphore, #tpu.memory_space<semaphore_mem>>
      %199 = tpu.memref_squeeze %198 : memref<1x!tpu.dma_semaphore, #tpu.memory_space<semaphore_mem>> -> memref<!tpu.dma_semaphore, #tpu.memory_space<semaphore_mem>>
      tpu.enqueue_dma source(%196 : memref<1x32xf32, #tpu.memory_space<any>>) target(%197 : memref<1x32xf32, #tpu.memory_space<vmem>>) target_semaphore(%199 : memref<!tpu.dma_semaphore, #tpu.memory_space<semaphore_mem>>)
      %c6_i32_99 = arith.constant 6 : i32
      %200 = arith.addi %132, %c6_i32_99 : i32
      %201 = arith.index_cast %200 : i32 to index
      %202 = memref.load %arg2[%201] : memref<32xi32, #tpu.memory_space<smem>>
      %c0_i32_100 = arith.constant 0 : i32
      %c31_i32_101 = arith.constant 31 : i32
      %203 = arith.maxsi %c0_i32_100, %202 : i32
      %204 = arith.minsi %c31_i32_101, %203 : i32
      %205 = arith.addi %133, %c6_i32_99 : i32
      %206 = arith.addi %133, %c6_i32_99 : i32
      %c0_i32_102 = arith.constant 0 : i32
      %207 = tpu.memref_slice %arg4[%204, %c0_i32_102] : memref<32x32xf32, #tpu.memory_space<any>> -> memref<1x32xf32, #tpu.memory_space<any>>
      %c0_i32_103 = arith.constant 0 : i32
      %208 = tpu.memref_slice %arg10[%205, %c0_i32_103] : memref<16x32xf32, #tpu.memory_space<vmem>> -> memref<1x32xf32, #tpu.memory_space<vmem>>
      %209 = tpu.memref_slice %arg11[%206] : memref<16x!tpu.dma_semaphore, #tpu.memory_space<semaphore_mem>> -> memref<1x!tpu.dma_semaphore, #tpu.memory_space<semaphore_mem>>
      %210 = tpu.memref_squeeze %209 : memref<1x!tpu.dma_semaphore, #tpu.memory_space<semaphore_mem>> -> memref<!tpu.dma_semaphore, #tpu.memory_space<semaphore_mem>>
      tpu.enqueue_dma source(%207 : memref<1x32xf32, #tpu.memory_space<any>>) target(%208 : memref<1x32xf32, #tpu.memory_space<vmem>>) target_semaphore(%210 : memref<!tpu.dma_semaphore, #tpu.memory_space<semaphore_mem>>)
      %c7_i32_104 = arith.constant 7 : i32
      %211 = arith.addi %132, %c7_i32_104 : i32
      %212 = arith.index_cast %211 : i32 to index
      %213 = memref.load %arg2[%212] : memref<32xi32, #tpu.memory_space<smem>>
      %c0_i32_105 = arith.constant 0 : i32
      %c31_i32_106 = arith.constant 31 : i32
      %214 = arith.maxsi %c0_i32_105, %213 : i32
      %215 = arith.minsi %c31_i32_106, %214 : i32
      %216 = arith.addi %133, %c7_i32_104 : i32
      %217 = arith.addi %133, %c7_i32_104 : i32
      %c0_i32_107 = arith.constant 0 : i32
      %218 = tpu.memref_slice %arg4[%215, %c0_i32_107] : memref<32x32xf32, #tpu.memory_space<any>> -> memref<1x32xf32, #tpu.memory_space<any>>
      %c0_i32_108 = arith.constant 0 : i32
      %219 = tpu.memref_slice %arg10[%216, %c0_i32_108] : memref<16x32xf32, #tpu.memory_space<vmem>> -> memref<1x32xf32, #tpu.memory_space<vmem>>
      %220 = tpu.memref_slice %arg11[%217] : memref<16x!tpu.dma_semaphore, #tpu.memory_space<semaphore_mem>> -> memref<1x!tpu.dma_semaphore, #tpu.memory_space<semaphore_mem>>
      %221 = tpu.memref_squeeze %220 : memref<1x!tpu.dma_semaphore, #tpu.memory_space<semaphore_mem>> -> memref<!tpu.dma_semaphore, #tpu.memory_space<semaphore_mem>>
      tpu.enqueue_dma source(%218 : memref<1x32xf32, #tpu.memory_space<any>>) target(%219 : memref<1x32xf32, #tpu.memory_space<vmem>>) target_semaphore(%221 : memref<!tpu.dma_semaphore, #tpu.memory_space<semaphore_mem>>)
      %c8_i32_109 = arith.constant 8 : i32
    } else {
    }
    %c0 = arith.constant 0 : index
    %c0_8 = arith.constant 0 : index
    %17 = vector.load %arg3[%c0, %c0_8] : memref<8x1xi32, #tpu.memory_space<vmem>>, vector<8x1xi32>
    %c0_9 = arith.constant 0 : index
    %c0_10 = arith.constant 0 : index
    %18 = vector.load %arg6[%c0_9, %c0_10] : memref<2x32xf32, #tpu.memory_space<vmem>>, vector<2x32xf32>
    %c0_11 = arith.constant 0 : index
    %c0_12 = arith.constant 0 : index
    %19 = vector.load %arg5[%c0_11, %c0_12] : memref<8x32xf32, #tpu.memory_space<vmem>>, vector<8x32xf32>
    %c0_i32_13 = arith.constant 0 : i32
    %20 = vector.broadcast %c0_i32_13 : i32 to vector<8x1xi32>
    %21 = arith.cmpi eq, %17, %20 : vector<8x1xi32>
    %cst = arith.constant 1.000000e+00 : f32
    %cst_14 = arith.constant 0.000000e+00 : f32
    %22 = vector.broadcast %cst : f32 to vector<8x1xf32>
    %23 = vector.broadcast %cst_14 : f32 to vector<8x1xf32>
    %24 = arith.select %21, %22, %23 : vector<8x1xi1>, vector<8x1xf32>
    %25 = vector.extract_strided_slice %18 {offsets = [0, 0], sizes = [1, 32], strides = [1, 1]} : vector<2x32xf32> to vector<1x32xf32>
    %26 = vector.broadcast %24 : vector<8x1xf32> to vector<8x32xf32>
    %27 = vector.broadcast %25 : vector<1x32xf32> to vector<8x32xf32>
    %28 = arith.mulf %26, %27 : vector<8x32xf32>
    %29 = arith.addf %19, %28 : vector<8x32xf32>
    %c1_i32_15 = arith.constant 1 : i32
    %30 = vector.broadcast %c1_i32_15 : i32 to vector<8x1xi32>
    %31 = arith.cmpi eq, %17, %30 : vector<8x1xi32>
    %cst_16 = arith.constant 1.000000e+00 : f32
    %cst_17 = arith.constant 0.000000e+00 : f32
    %32 = vector.broadcast %cst_16 : f32 to vector<8x1xf32>
    %33 = vector.broadcast %cst_17 : f32 to vector<8x1xf32>
    %34 = arith.select %31, %32, %33 : vector<8x1xi1>, vector<8x1xf32>
    %35 = vector.extract_strided_slice %18 {offsets = [1, 0], sizes = [1, 32], strides = [1, 1]} : vector<2x32xf32> to vector<1x32xf32>
    %36 = vector.broadcast %34 : vector<8x1xf32> to vector<8x32xf32>
    %37 = vector.broadcast %35 : vector<1x32xf32> to vector<8x32xf32>
    %38 = arith.mulf %36, %37 : vector<8x32xf32>
    %39 = arith.addf %29, %38 : vector<8x32xf32>
    %c8_i32 = arith.constant 8 : i32
    %40 = arith.muli %9, %c8_i32 : i32
    %c0_i32_18 = arith.constant 0 : i32
    %41 = arith.addi %40, %c0_i32_18 : i32
    %42 = arith.addi %40, %c0_i32_18 : i32
    %c0_i32_19 = arith.constant 0 : i32
    %c0_i32_20 = arith.constant 0 : i32
    %43 = tpu.memref_slice %arg4[%c0_i32_19, %c0_i32_20] : memref<32x32xf32, #tpu.memory_space<any>> -> memref<1x32xf32, #tpu.memory_space<any>>
    %c0_i32_21 = arith.constant 0 : i32
    %44 = tpu.memref_slice %arg10[%41, %c0_i32_21] : memref<16x32xf32, #tpu.memory_space<vmem>> -> memref<1x32xf32, #tpu.memory_space<vmem>>
    %45 = tpu.memref_slice %arg11[%42] : memref<16x!tpu.dma_semaphore, #tpu.memory_space<semaphore_mem>> -> memref<1x!tpu.dma_semaphore, #tpu.memory_space<semaphore_mem>>
    %46 = tpu.memref_squeeze %45 : memref<1x!tpu.dma_semaphore, #tpu.memory_space<semaphore_mem>> -> memref<!tpu.dma_semaphore, #tpu.memory_space<semaphore_mem>>
    tpu.wait_dma2 semaphore(%46 : memref<!tpu.dma_semaphore, #tpu.memory_space<semaphore_mem>>) src(%43 : memref<1x32xf32, #tpu.memory_space<any>>) dst(%44 : memref<1x32xf32, #tpu.memory_space<vmem>>)
    %c1_i32_22 = arith.constant 1 : i32
    %47 = arith.addi %40, %c1_i32_22 : i32
    %48 = arith.addi %40, %c1_i32_22 : i32
    %c0_i32_23 = arith.constant 0 : i32
    %c0_i32_24 = arith.constant 0 : i32
    %49 = tpu.memref_slice %arg4[%c0_i32_23, %c0_i32_24] : memref<32x32xf32, #tpu.memory_space<any>> -> memref<1x32xf32, #tpu.memory_space<any>>
    %c0_i32_25 = arith.constant 0 : i32
    %50 = tpu.memref_slice %arg10[%47, %c0_i32_25] : memref<16x32xf32, #tpu.memory_space<vmem>> -> memref<1x32xf32, #tpu.memory_space<vmem>>
    %51 = tpu.memref_slice %arg11[%48] : memref<16x!tpu.dma_semaphore, #tpu.memory_space<semaphore_mem>> -> memref<1x!tpu.dma_semaphore, #tpu.memory_space<semaphore_mem>>
    %52 = tpu.memref_squeeze %51 : memref<1x!tpu.dma_semaphore, #tpu.memory_space<semaphore_mem>> -> memref<!tpu.dma_semaphore, #tpu.memory_space<semaphore_mem>>
    tpu.wait_dma2 semaphore(%52 : memref<!tpu.dma_semaphore, #tpu.memory_space<semaphore_mem>>) src(%49 : memref<1x32xf32, #tpu.memory_space<any>>) dst(%50 : memref<1x32xf32, #tpu.memory_space<vmem>>)
    %c2_i32_26 = arith.constant 2 : i32
    %53 = arith.addi %40, %c2_i32_26 : i32
    %54 = arith.addi %40, %c2_i32_26 : i32
    %c0_i32_27 = arith.constant 0 : i32
    %c0_i32_28 = arith.constant 0 : i32
    %55 = tpu.memref_slice %arg4[%c0_i32_27, %c0_i32_28] : memref<32x32xf32, #tpu.memory_space<any>> -> memref<1x32xf32, #tpu.memory_space<any>>
    %c0_i32_29 = arith.constant 0 : i32
    %56 = tpu.memref_slice %arg10[%53, %c0_i32_29] : memref<16x32xf32, #tpu.memory_space<vmem>> -> memref<1x32xf32, #tpu.memory_space<vmem>>
    %57 = tpu.memref_slice %arg11[%54] : memref<16x!tpu.dma_semaphore, #tpu.memory_space<semaphore_mem>> -> memref<1x!tpu.dma_semaphore, #tpu.memory_space<semaphore_mem>>
    %58 = tpu.memref_squeeze %57 : memref<1x!tpu.dma_semaphore, #tpu.memory_space<semaphore_mem>> -> memref<!tpu.dma_semaphore, #tpu.memory_space<semaphore_mem>>
    tpu.wait_dma2 semaphore(%58 : memref<!tpu.dma_semaphore, #tpu.memory_space<semaphore_mem>>) src(%55 : memref<1x32xf32, #tpu.memory_space<any>>) dst(%56 : memref<1x32xf32, #tpu.memory_space<vmem>>)
    %c3_i32 = arith.constant 3 : i32
    %59 = arith.addi %40, %c3_i32 : i32
    %60 = arith.addi %40, %c3_i32 : i32
    %c0_i32_30 = arith.constant 0 : i32
    %c0_i32_31 = arith.constant 0 : i32
    %61 = tpu.memref_slice %arg4[%c0_i32_30, %c0_i32_31] : memref<32x32xf32, #tpu.memory_space<any>> -> memref<1x32xf32, #tpu.memory_space<any>>
    %c0_i32_32 = arith.constant 0 : i32
    %62 = tpu.memref_slice %arg10[%59, %c0_i32_32] : memref<16x32xf32, #tpu.memory_space<vmem>> -> memref<1x32xf32, #tpu.memory_space<vmem>>
    %63 = tpu.memref_slice %arg11[%60] : memref<16x!tpu.dma_semaphore, #tpu.memory_space<semaphore_mem>> -> memref<1x!tpu.dma_semaphore, #tpu.memory_space<semaphore_mem>>
    %64 = tpu.memref_squeeze %63 : memref<1x!tpu.dma_semaphore, #tpu.memory_space<semaphore_mem>> -> memref<!tpu.dma_semaphore, #tpu.memory_space<semaphore_mem>>
    tpu.wait_dma2 semaphore(%64 : memref<!tpu.dma_semaphore, #tpu.memory_space<semaphore_mem>>) src(%61 : memref<1x32xf32, #tpu.memory_space<any>>) dst(%62 : memref<1x32xf32, #tpu.memory_space<vmem>>)
    %c4_i32 = arith.constant 4 : i32
    %65 = arith.addi %40, %c4_i32 : i32
    %66 = arith.addi %40, %c4_i32 : i32
    %c0_i32_33 = arith.constant 0 : i32
    %c0_i32_34 = arith.constant 0 : i32
    %67 = tpu.memref_slice %arg4[%c0_i32_33, %c0_i32_34] : memref<32x32xf32, #tpu.memory_space<any>> -> memref<1x32xf32, #tpu.memory_space<any>>
    %c0_i32_35 = arith.constant 0 : i32
    %68 = tpu.memref_slice %arg10[%65, %c0_i32_35] : memref<16x32xf32, #tpu.memory_space<vmem>> -> memref<1x32xf32, #tpu.memory_space<vmem>>
    %69 = tpu.memref_slice %arg11[%66] : memref<16x!tpu.dma_semaphore, #tpu.memory_space<semaphore_mem>> -> memref<1x!tpu.dma_semaphore, #tpu.memory_space<semaphore_mem>>
    %70 = tpu.memref_squeeze %69 : memref<1x!tpu.dma_semaphore, #tpu.memory_space<semaphore_mem>> -> memref<!tpu.dma_semaphore, #tpu.memory_space<semaphore_mem>>
    tpu.wait_dma2 semaphore(%70 : memref<!tpu.dma_semaphore, #tpu.memory_space<semaphore_mem>>) src(%67 : memref<1x32xf32, #tpu.memory_space<any>>) dst(%68 : memref<1x32xf32, #tpu.memory_space<vmem>>)
    %c5_i32 = arith.constant 5 : i32
    %71 = arith.addi %40, %c5_i32 : i32
    %72 = arith.addi %40, %c5_i32 : i32
    %c0_i32_36 = arith.constant 0 : i32
    %c0_i32_37 = arith.constant 0 : i32
    %73 = tpu.memref_slice %arg4[%c0_i32_36, %c0_i32_37] : memref<32x32xf32, #tpu.memory_space<any>> -> memref<1x32xf32, #tpu.memory_space<any>>
    %c0_i32_38 = arith.constant 0 : i32
    %74 = tpu.memref_slice %arg10[%71, %c0_i32_38] : memref<16x32xf32, #tpu.memory_space<vmem>> -> memref<1x32xf32, #tpu.memory_space<vmem>>
    %75 = tpu.memref_slice %arg11[%72] : memref<16x!tpu.dma_semaphore, #tpu.memory_space<semaphore_mem>> -> memref<1x!tpu.dma_semaphore, #tpu.memory_space<semaphore_mem>>
    %76 = tpu.memref_squeeze %75 : memref<1x!tpu.dma_semaphore, #tpu.memory_space<semaphore_mem>> -> memref<!tpu.dma_semaphore, #tpu.memory_space<semaphore_mem>>
    tpu.wait_dma2 semaphore(%76 : memref<!tpu.dma_semaphore, #tpu.memory_space<semaphore_mem>>) src(%73 : memref<1x32xf32, #tpu.memory_space<any>>) dst(%74 : memref<1x32xf32, #tpu.memory_space<vmem>>)
    %c6_i32 = arith.constant 6 : i32
    %77 = arith.addi %40, %c6_i32 : i32
    %78 = arith.addi %40, %c6_i32 : i32
    %c0_i32_39 = arith.constant 0 : i32
    %c0_i32_40 = arith.constant 0 : i32
    %79 = tpu.memref_slice %arg4[%c0_i32_39, %c0_i32_40] : memref<32x32xf32, #tpu.memory_space<any>> -> memref<1x32xf32, #tpu.memory_space<any>>
    %c0_i32_41 = arith.constant 0 : i32
    %80 = tpu.memref_slice %arg10[%77, %c0_i32_41] : memref<16x32xf32, #tpu.memory_space<vmem>> -> memref<1x32xf32, #tpu.memory_space<vmem>>
    %81 = tpu.memref_slice %arg11[%78] : memref<16x!tpu.dma_semaphore, #tpu.memory_space<semaphore_mem>> -> memref<1x!tpu.dma_semaphore, #tpu.memory_space<semaphore_mem>>
    %82 = tpu.memref_squeeze %81 : memref<1x!tpu.dma_semaphore, #tpu.memory_space<semaphore_mem>> -> memref<!tpu.dma_semaphore, #tpu.memory_space<semaphore_mem>>
    tpu.wait_dma2 semaphore(%82 : memref<!tpu.dma_semaphore, #tpu.memory_space<semaphore_mem>>) src(%79 : memref<1x32xf32, #tpu.memory_space<any>>) dst(%80 : memref<1x32xf32, #tpu.memory_space<vmem>>)
    %c7_i32 = arith.constant 7 : i32
    %83 = arith.addi %40, %c7_i32 : i32
    %84 = arith.addi %40, %c7_i32 : i32
    %c0_i32_42 = arith.constant 0 : i32
    %c0_i32_43 = arith.constant 0 : i32
    %85 = tpu.memref_slice %arg4[%c0_i32_42, %c0_i32_43] : memref<32x32xf32, #tpu.memory_space<any>> -> memref<1x32xf32, #tpu.memory_space<any>>
    %c0_i32_44 = arith.constant 0 : i32
    %86 = tpu.memref_slice %arg10[%83, %c0_i32_44] : memref<16x32xf32, #tpu.memory_space<vmem>> -> memref<1x32xf32, #tpu.memory_space<vmem>>
    %87 = tpu.memref_slice %arg11[%84] : memref<16x!tpu.dma_semaphore, #tpu.memory_space<semaphore_mem>> -> memref<1x!tpu.dma_semaphore, #tpu.memory_space<semaphore_mem>>
    %88 = tpu.memref_squeeze %87 : memref<1x!tpu.dma_semaphore, #tpu.memory_space<semaphore_mem>> -> memref<!tpu.dma_semaphore, #tpu.memory_space<semaphore_mem>>
    tpu.wait_dma2 semaphore(%88 : memref<!tpu.dma_semaphore, #tpu.memory_space<semaphore_mem>>) src(%85 : memref<1x32xf32, #tpu.memory_space<any>>) dst(%86 : memref<1x32xf32, #tpu.memory_space<vmem>>)
    %c8_i32_45 = arith.constant 8 : i32
    %89 = tpu.assume_multiple %40, 8 : i32
    %90 = arith.index_cast %89 : i32 to index
    %c0_46 = arith.constant 0 : index
    %91 = vector.load %arg10[%90, %c0_46] : memref<16x32xf32, #tpu.memory_space<vmem>>, vector<8x32xf32>
    %92 = arith.addf %39, %91 : vector<8x32xf32>
    %cst_47 = arith.constant dense<0.000000e+00> : vector<8xf32>
    %93 = vector.multi_reduction <add>, %92, %cst_47 [1] : vector<8x32xf32> to vector<8xf32>
    %94 = vector.shape_cast %93 : vector<8xf32> to vector<8x1xf32>
    %cst_48 = arith.constant 3.200000e+01 : f32
    %95 = vector.broadcast %cst_48 : f32 to vector<8x1xf32>
    %96 = arith.divf %94, %95 : vector<8x1xf32>
    %97 = vector.broadcast %96 : vector<8x1xf32> to vector<8x32xf32>
    %98 = arith.subf %92, %97 : vector<8x32xf32>
    %99 = arith.mulf %98, %98 : vector<8x32xf32>
    %cst_49 = arith.constant dense<0.000000e+00> : vector<8xf32>
    %100 = vector.multi_reduction <add>, %99, %cst_49 [1] : vector<8x32xf32> to vector<8xf32>
    %101 = vector.shape_cast %100 : vector<8xf32> to vector<8x1xf32>
    %cst_50 = arith.constant 3.200000e+01 : f32
    %102 = vector.broadcast %cst_50 : f32 to vector<8x1xf32>
    %103 = arith.divf %101, %102 : vector<8x1xf32>
    %cst_51 = arith.constant 9.99999996E-13 : f32
    %104 = vector.broadcast %cst_51 : f32 to vector<8x1xf32>
    %105 = arith.addf %103, %104 : vector<8x1xf32>
    %106 = math.rsqrt %105 : vector<8x1xf32>
    %107 = vector.broadcast %106 : vector<8x1xf32> to vector<8x32xf32>
    %108 = arith.mulf %98, %107 : vector<8x32xf32>
    %c0_52 = arith.constant 0 : index
    %c0_53 = arith.constant 0 : index
    %109 = vector.load %arg7[%c0_52, %c0_53] : memref<1x32xf32, #tpu.memory_space<vmem>>, vector<1x32xf32>
    %110 = vector.broadcast %109 : vector<1x32xf32> to vector<8x32xf32>
    %111 = arith.mulf %108, %110 : vector<8x32xf32>
    %c0_54 = arith.constant 0 : index
    %c0_55 = arith.constant 0 : index
    %112 = vector.load %arg8[%c0_54, %c0_55] : memref<1x32xf32, #tpu.memory_space<vmem>>, vector<1x32xf32>
    %113 = vector.broadcast %112 : vector<1x32xf32> to vector<8x32xf32>
    %114 = arith.addf %111, %113 : vector<8x32xf32>
    %c0_56 = arith.constant 0 : index
    %c0_57 = arith.constant 0 : index
    %c0_58 = arith.constant 0 : index
    %115 = vector.load %arg9[%c0_56, %c0_57, %c0_58] : memref<1x8x32xf32, #tpu.memory_space<vmem>>, vector<1x8x32xf32>
    %116 = vector.shape_cast %115 : vector<1x8x32xf32> to vector<8x32xf32>
    %117 = vector.shape_cast %114 : vector<8x32xf32> to vector<1x8x32xf32>
    tpu.vector_store %arg9[%c0_56, %c0_57, %c0_58], %117 {strides = array<i32>} : memref<1x8x32xf32, #tpu.memory_space<vmem>>, vector<1x8x32xf32>,
    return
  }
  func.func @transform_0(%arg0: i32, %arg1: i32, %arg2: memref<32xi32, #tpu.memory_space<smem>>) -> (i32, i32) {
    %c2_i32 = arith.constant 2 : i32
    %0 = arith.muli %arg0, %c2_i32 : i32
    %1 = arith.addi %0, %arg1 : i32
    %c0_i32 = arith.constant 0 : i32
    %c0_i32_0 = arith.constant 0 : i32
    return %1, %c0_i32 : i32, i32
  }
  func.func @transform_2(%arg0: i32, %arg1: i32, %arg2: memref<32xi32, #tpu.memory_space<smem>>) -> (i32, i32) {
    %c0_i32 = arith.constant 0 : i32
    %c0_i32_0 = arith.constant 0 : i32
    return %arg1, %c0_i32 : i32, i32
  }
  func.func @transform_3(%arg0: i32, %arg1: i32, %arg2: memref<32xi32, #tpu.memory_space<smem>>) -> (i32, i32) {
    %c0_i32 = arith.constant 0 : i32
    %c0_i32_0 = arith.constant 0 : i32
    %c0_i32_1 = arith.constant 0 : i32
    return %c0_i32, %c0_i32_0 : i32, i32
  }
  func.func @transform_4(%arg0: i32, %arg1: i32, %arg2: memref<32xi32, #tpu.memory_space<smem>>) -> (i32, i32) {
    %c0_i32 = arith.constant 0 : i32
    %c0_i32_0 = arith.constant 0 : i32
    %c0_i32_1 = arith.constant 0 : i32
    return %c0_i32, %c0_i32_0 : i32, i32
  }
  func.func @transform_5(%arg0: i32, %arg1: i32, %arg2: memref<32xi32, #tpu.memory_space<smem>>) -> (i32, i32) {
    %c0_i32 = arith.constant 0 : i32
    %c0_i32_0 = arith.constant 0 : i32
    %c0_i32_1 = arith.constant 0 : i32
    return %c0_i32, %c0_i32_0 : i32, i32
  }
  func.func @transform_6(%arg0: i32, %arg1: i32, %arg2: memref<32xi32, #tpu.memory_space<smem>>) -> (i32, i32, i32) {
    %c0_i32 = arith.constant 0 : i32
    %c0_i32_0 = arith.constant 0 : i32
    return %arg0, %arg1, %c0_i32 : i32, i32, i32
  }
}

</mosaic_0001>

<llo_original>
// kernel: tpu_custom_call.1
$region0: #{tpu_custom_call.1}
  #allocation0 [shape = 'u32[]', space=smem, size = 0x4, offset = 0x4, fixed_abs, tag = 'smem constant byte address 0x4 - core index']
  #allocation1 [shape = 'u32[72,128]{1,0:T(1,128)}', space=vmem, size = 0x9000, scoped, tag = 'internal scratch']
  #allocation2 [shape = 'f32[16,32]{1,0:T(8,128)}', space=vmem, size = 0x2000, scoped, tag = 'scratch operand']
  #allocation3 [shape = 's32[16]{0}', space=sflag, size = 0x40, scoped, tag = 'scratch operand']
  #allocation4 [shape = 's32[1]{0}', space=sflag, size = 0x4, scoped, tag = 'scoped memory for tpu_custom_call.1']
  #allocation5 [shape = 'u8[512]{0}', space=smem, size = 0x200, scoped, tag = 'prefetched SMEM operand 0']
  #allocation10 [shape = 's32[]', space=sflag, size = 0x4, offset = 0, fixed_abs, tag = 'sflag constant byte address 0x0 - dummy sync flag']
  #allocation11 [shape = 's32[]', space=sflag, size = 0x4, offset = 0, fixed_abs, tag = 'sflag constant byte address 0x0 - dummy sync flag']
  #allocation12 [shape = 's32[]', space=sflag, size = 0x4, offset = 0, fixed_abs, tag = 'sflag constant byte address 0x0 - dummy sync flag']
  #allocation13 [shape = 's32[]', space=sflag, size = 0x4, offset = 0, fixed_abs, tag = 'sflag constant byte address 0x0 - dummy sync flag']
  #allocation14 [shape = 's32[]', space=sflag, size = 0x4, offset = 0, fixed_abs, tag = 'sflag constant byte address 0x0 - dummy sync flag']
  #allocation15 [shape = 's32[]', space=sflag, size = 0x4, offset = 0, fixed_abs, tag = 'sflag constant byte address 0x0 - dummy sync flag']
  #allocation16 [shape = 's32[]', space=sflag, size = 0x4, offset = 0, fixed_abs, tag = 'sflag constant byte address 0x0 - dummy sync flag']
  #allocation17 [shape = 's32[]', space=sflag, size = 0x4, offset = 0, fixed_abs, tag = 'sflag constant byte address 0x0 - dummy sync flag']
  #allocation18 [shape = 's32[]', space=sflag, size = 0x4, offset = 0, fixed_abs, tag = 'sflag constant byte address 0x0 - dummy sync flag']
  #allocation19 [shape = 's32[]', space=sflag, size = 0x4, offset = 0, fixed_abs, tag = 'sflag constant byte address 0x0 - dummy sync flag']
  #allocation20 [shape = 's32[]', space=sflag, size = 0x4, offset = 0, fixed_abs, tag = 'sflag constant byte address 0x0 - dummy sync flag']
  #allocation21 [shape = 's32[]', space=sflag, size = 0x4, offset = 0, fixed_abs, tag = 'sflag constant byte address 0x0 - dummy sync flag']
  #allocation22 [shape = 's32[]', space=sflag, size = 0x4, offset = 0, fixed_abs, tag = 'sflag constant byte address 0x0 - dummy sync flag']
  #allocation23 [shape = 's32[]', space=sflag, size = 0x4, offset = 0, fixed_abs, tag = 'sflag constant byte address 0x0 - dummy sync flag']
  #allocation24 [shape = 's32[]', space=sflag, size = 0x4, offset = 0, fixed_abs, tag = 'sflag constant byte address 0x0 - dummy sync flag']
  #allocation25 [shape = 's32[]', space=sflag, size = 0x4, offset = 0, fixed_abs, tag = 'sflag constant byte address 0x0 - dummy sync flag']
  %s0 = inlined_call_operand.hbm [shape: s32[32], index: 0, kind: input, shape index: {}]
  %s1 = inlined_call_operand.vmem [shape: s32[32,1], index: 1, kind: input, shape index: {}]
  %s2 = inlined_call_operand.vmem [shape: f32[32,32], index: 2, kind: input, shape index: {}]
  %s3 = inlined_call_operand.hbm [shape: f32[16,32], index: 3, kind: input, shape index: {}]
  %s4 = inlined_call_operand.vmem [shape: f32[2,32], index: 4, kind: input, shape index: {}]
  %s5 = inlined_call_operand.vmem [shape: f32[1,32], index: 5, kind: input, shape index: {}]
  %s6 = inlined_call_operand.vmem [shape: f32[1,32], index: 6, kind: input, shape index: {}]
  %s7 = inlined_call_operand.hbm [shape: f32[2,16,32], index: 7, kind: output, shape index: {}]
  %s8 = sld [smem:[#allocation0]]
  $region545: #{tpu_custom_call.1} parent=0
    _
  %s10 = ssub.s32 1, %s8
  %s11 = scalar_select 0, %s10, %s8
  %s13 = sshll.u32 %s0, 4
  %s14 = int_to_ptr.hbm [resolvable:$true] %s13
  %16 = dma.hbm_to_smem %s14, 16, [#allocation5], [#allocation4]
  %18 = dma.done [#allocation4], 16
  %19 = sfence
  $region1: #{tpu_custom_call.1} parent=0
    #allocation6 [shape = 'u8[8192]{0}', space=vmem, size = 0x2000, scoped, tag = 'input window, operand 3']
    #allocation7 [shape = 's32[2]{0}', space=sflag, size = 0x8, scoped, tag = 'scoped memory for tpu_custom_call.1']
    #allocation8 [shape = 's32[2]{0}', space=sflag, size = 0x8, scoped, tag = 'scoped memory for tpu_custom_call.1']
    #allocation9 [shape = 'u8[8192]{0}', space=vmem, size = 0x2000, scoped, tag = 'output window, operand 0']
    %20 = vsyncpa [#allocation7], 0
    %s21 = scalar_lea.sflag [#allocation7], 1
    %22 = vsyncpa %s21, 0
    %23 = vsyncpa [#allocation8], 0
    %s24 = scalar_lea.sflag [#allocation8], 1
    %25 = vsyncpa %s24, 0
    loop: start=0, step=1, limit=6
    $region2: #{tpu_custom_call.1} parent=1 // loop_pre_header
      _
    $region3: #{tpu_custom_call.1} parent=1 // loop_header
      %s27 = sphi 0, %s31
      %p28 = scmp.ge.s32.totalorder %s27, 6
      %s34 = sphi 0, %s46
      %s35 = sphi 0, %s42
      %s36 = sphi 0, %s34
      %s37 = sphi 0, %s35
      %s38 = sphi 0, %s36
      %s39 = sphi 0, %s37
      %s53 = sphi 0, %s55
      %s56 = sphi 0, %s53
      %s57 = sphi 0, %s56
      %s73 = sphi 0, %s57
      %s79 = sphi 0, %s81
      %s82 = sphi 0, %s79
      %s83 = sphi 0, %s82
      %s99 = sphi 0, %s83
      %s103 = sphi 0, %s103
      %s105 = sphi 0, %s103
      %s106 = sphi 0, %s105
      %s120 = sphi 0, %s106
      %s124 = sphi 0, %s124
      %s126 = sphi 0, %s124
      %s127 = sphi 0, %s126
      %s141 = sphi 0, %s127
      %s145 = sphi 0, %s145
      %s147 = sphi 0, %s145
      %s148 = sphi 0, %s147
      %s162 = sphi 0, %s148
      %s170 = sphi 0, %s172
      %s173 = sphi 0, %s170
      %s174 = sphi 0, %s173
      %s190 = sphi 0, %s174
    $region4: #{tpu_custom_call.1} parent=1 // loop_header_branch
      %30 = sbr.rel (%p28) target = $region8
    $region5: #{tpu_custom_call.1} parent=1 // loop_body
      %s32 = ssub.s32 %s27, 1
      %s33 = ssub.s32 %s27, 2
      %s40 = sadd.s32 1, %s35
      %p41 = scmp.ge.s32.totalorder %s40, 2
      %s42 = scalar_select %p41, 0, %s40
      %s43 = sadd.s32 1, %s34
      %s44 = scalar_select %p41, %s43, %s34
      %p45 = scmp.ge.s32.totalorder %s44, 2
      %s46 = scalar_select %p45, 0, %s44
      %s47 = smul.u32 %s34, 2
      %s48 = sadd.s32 %s47, %s35
      %s49 = smul.u32 %s46, 2
      %s50 = sadd.s32 %s49, %s42
      %s51 = ssub.s32 %s48, %s50
      %p52 = scmp.eq.s32.totalorder %s51, 0
      %s54 = sadd.s32 %s53, 1
      %s55 = scalar_select %p52, %s53, %s54
      %p58 = pneg %p52
      %p59 = scmp.eq.s32.totalorder %s27, 3
      %p60 = por %p58, %p59
      %p61 = scmp.ne.s32.totalorder %s53, %s56
      %p62 = scmp.eq.s32.totalorder %s27, 0
      %p63 = por %p61, %p62
      %p64 = scmp.ne.s32.totalorder %s53, %s56
      %p65 = scmp.eq.s32.totalorder %s32, 3
      %p66 = por %p64, %p65
      %p67 = scmp.ne.s32.totalorder %s56, %s57
      %p68 = scmp.eq.s32.totalorder %s32, 0
      %p69 = por %p67, %p68
      %p70 = scmp.ne.s32.totalorder %s56, %s57
      %p71 = scmp.eq.s32.totalorder %s33, 3
      %p72 = por %p70, %p71
      %p74 = scmp.ne.s32.totalorder %s57, %s73
      %p75 = scmp.eq.s32.totalorder %s33, 0
      %p76 = por %p74, %p75
      %s77 = ssub.s32 %s35, %s42
      %p78 = scmp.eq.s32.totalorder %s77, 0
      %s80 = sadd.s32 %s79, 1
      %s81 = scalar_select %p78, %s79, %s80
      %p84 = pneg %p78
      %p85 = scmp.eq.s32.totalorder %s27, 3
      %p86 = por %p84, %p85
      %p87 = scmp.ne.s32.totalorder %s79, %s82
      %p88 = scmp.eq.s32.totalorder %s27, 0
      %p89 = por %p87, %p88
      %p90 = scmp.ne.s32.totalorder %s79, %s82
      %p91 = scmp.eq.s32.totalorder %s32, 3
      %p92 = por %p90, %p91
      %p93 = scmp.ne.s32.totalorder %s82, %s83
      %p94 = scmp.eq.s32.totalorder %s32, 0
      %p95 = por %p93, %p94
      %p96 = scmp.ne.s32.totalorder %s82, %s83
      %p97 = scmp.eq.s32.totalorder %s33, 3
      %p98 = por %p96, %p97
      %p100 = scmp.ne.s32.totalorder %s83, %s99
      %p101 = scmp.eq.s32.totalorder %s33, 0
      %p102 = por %p100, %p101
      %s104 = sadd.s32 %s103, 1
      %p107 = scmp.eq.s32.totalorder %s27, 3
      %p108 = scmp.ne.s32.totalorder %s103, %s105
      %p109 = scmp.eq.s32.totalorder %s27, 0
      %p110 = por %p108, %p109
      %p111 = scmp.ne.s32.totalorder %s103, %s105
      %p112 = scmp.eq.s32.totalorder %s32, 3
      %p113 = por %p111, %p112
      %p114 = scmp.ne.s32.totalorder %s105, %s106
      %p115 = scmp.eq.s32.totalorder %s32, 0
      %p116 = por %p114, %p115
      %p117 = scmp.ne.s32.totalorder %s105, %s106
      %p118 = scmp.eq.s32.totalorder %s33, 3
      %p119 = por %p117, %p118
      %p121 = scmp.ne.s32.totalorder %s106, %s120
      %p122 = scmp.eq.s32.totalorder %s33, 0
      %p123 = por %p121, %p122
      %s125 = sadd.s32 %s124, 1
      %p128 = scmp.eq.s32.totalorder %s27, 3
      %p129 = scmp.ne.s32.totalorder %s124, %s126
      %p130 = scmp.eq.s32.totalorder %s27, 0
      %p131 = por %p129, %p130
      %p132 = scmp.ne.s32.totalorder %s124, %s126
      %p133 = scmp.eq.s32.totalorder %s32, 3
      %p134 = por %p132, %p133
      %p135 = scmp.ne.s32.totalorder %s126, %s127
      %p136 = scmp.eq.s32.totalorder %s32, 0
      %p137 = por %p135, %p136
      %p138 = scmp.ne.s32.totalorder %s126, %s127
      %p139 = scmp.eq.s32.totalorder %s33, 3
      %p140 = por %p138, %p139
      %p142 = scmp.ne.s32.totalorder %s127, %s141
      %p143 = scmp.eq.s32.totalorder %s33, 0
      %p144 = por %p142, %p143
      %s146 = sadd.s32 %s145, 1
      %p149 = scmp.eq.s32.totalorder %s27, 3
      %p150 = scmp.ne.s32.totalorder %s145, %s147
      %p151 = scmp.eq.s32.totalorder %s27, 0
      %p152 = por %p150, %p151
      %p153 = scmp.ne.s32.totalorder %s145, %s147
      %p154 = scmp.eq.s32.totalorder %s32, 3
      %p155 = por %p153, %p154
      %p156 = scmp.ne.s32.totalorder %s147, %s148
      %p157 = scmp.eq.s32.totalorder %s32, 0
      %p158 = por %p156, %p157
      %p159 = scmp.ne.s32.totalorder %s147, %s148
      %p160 = scmp.eq.s32.totalorder %s33, 3
      %p161 = por %p159, %p160
      %p163 = scmp.ne.s32.totalorder %s148, %s162
      %p164 = scmp.eq.s32.totalorder %s33, 0
      %p165 = por %p163, %p164
      %s166 = ssub.s32 %s34, %s46
      %s167 = ssub.s32 %s35, %s42
      %s168 = sor.u32 %s166, %s167
      %p169 = scmp.eq.s32.totalorder %s168, 0
      %s171 = sadd.s32 %s170, 1
      %s172 = scalar_select %p169, %s170, %s171
      %p175 = pneg %p169
      %p176 = scmp.eq.s32.totalorder %s27, 3
      %p177 = por %p175, %p176
      %p178 = scmp.ne.s32.totalorder %s170, %s173
      %p179 = scmp.eq.s32.totalorder %s27, 0
      %p180 = por %p178, %p179
      %p181 = scmp.ne.s32.totalorder %s170, %s173
      %p182 = scmp.eq.s32.totalorder %s32, 3
      %p183 = por %p181, %p182
      %p184 = scmp.ne.s32.totalorder %s173, %s174
      %p185 = scmp.eq.s32.totalorder %s32, 0
      %p186 = por %p184, %p185
      %p187 = scmp.ne.s32.totalorder %s173, %s174
      %p188 = scmp.eq.s32.totalorder %s33, 3
      %p189 = por %p187, %p188
      %p191 = scmp.ne.s32.totalorder %s174, %s190
      %p192 = scmp.eq.s32.totalorder %s33, 0
      %p193 = por %p191, %p192
      %p194 = scmp.le.s32.totalorder 1, %s27
      %p195 = scmp.lt.s32.totalorder %s27, 5
      %p196 = pnand %p194, %p195
      %p197 = pneg %p196
      // Predicated region
      $region9: #{tpu_custom_call.1} parent=5 // pred_check
        _
      $region10: #{tpu_custom_call.1} parent=5 // pred_check_branch
        %199 = sbr.rel (%p196) target = $region12
      $region11: #{tpu_custom_call.1} parent=5 // pred_region
        %s200 = ssub.s32 %s27, 1
        // Predicated region
        $region13: #{tpu_custom_call.1} parent=11 // pred_check
          %p201 = pneg %p116
        $region14: #{tpu_custom_call.1} parent=11 // pred_check_branch
          %203 = sbr.rel (%p201) target = $region16
        $region15: #{tpu_custom_call.1} parent=11 // pred_region
          _
        $region16: #{tpu_custom_call.1} parent=11 // pred_fallthru
          _
        // Predicated region
        $region17: #{tpu_custom_call.1} parent=11 // pred_check
          %p204 = pneg %p137
        $region18: #{tpu_custom_call.1} parent=11 // pred_check_branch
          %206 = sbr.rel (%p204) target = $region20
        $region19: #{tpu_custom_call.1} parent=11 // pred_region
          _
        $region20: #{tpu_custom_call.1} parent=11 // pred_fallthru
          _
        // Predicated region
        $region21: #{tpu_custom_call.1} parent=11 // pred_check
          %p207 = pneg %p158
        $region22: #{tpu_custom_call.1} parent=11 // pred_check_branch
          %209 = sbr.rel (%p207) target = $region24
        $region23: #{tpu_custom_call.1} parent=11 // pred_region
          _
        $region24: #{tpu_custom_call.1} parent=11 // pred_fallthru
          _
      $region12: #{tpu_custom_call.1} parent=5 // pred_fallthru
        _
      %p210 = scmp.lt.s32.totalorder %s27, 4
      // Predicated region
      $region25: #{tpu_custom_call.1} parent=5 // pred_check
        %p211 = pneg %p210
      $region26: #{tpu_custom_call.1} parent=5 // pred_check_branch
        %213 = sbr.rel (%p211) target = $region28
      $region27: #{tpu_custom_call.1} parent=5 // pred_region
        // Predicated region
        $region29: #{tpu_custom_call.1} parent=27 // pred_check
          %p214 = pneg %p63
        $region30: #{tpu_custom_call.1} parent=27 // pred_check_branch
          %216 = sbr.rel (%p214) target = $region32
        $region31: #{tpu_custom_call.1} parent=27 // pred_region
          %s217 = smul.u32 %s34, 2
          %s218 = sadd.s32 %s217, %s35
          %p219 = scmp.lt.s32.totalorder %s218, 3
          %s220 = scalar_select %p219, %s218, 3
          %s221 = smul.addr %s220, 8
          %s222 = scalar_lea.vmem %s1, %s221
          %s223 = smul.u32 %s34, 2
          %s224 = sadd.s32 %s223, %s35
        $region32: #{tpu_custom_call.1} parent=27 // pred_fallthru
          _
        // Predicated region
        $region33: #{tpu_custom_call.1} parent=27 // pred_check
          %p225 = pneg %p89
        $region34: #{tpu_custom_call.1} parent=27 // pred_check_branch
          %227 = sbr.rel (%p225) target = $region36
        $region35: #{tpu_custom_call.1} parent=27 // pred_region
          %s228 = sand.u32 %s79, 1
          %s229 = scalar_lea.sflag [#allocation7], %s228
          %s230 = sand.u32 %s79, 1
          %s231 = smul.addr %s230, 8
          %s232 = scalar_lea.vmem [#allocation6], %s231
          %234 = vsyncadd %s229, 0
          %s235 = smul.addr %s35, 8
          %s236 = scalar_lea.hbm %s3, %s235
          %s238 = sshll.u32 %s236, 4
          %s239 = int_to_ptr.hbm [resolvable:$true] %s238
          %s240 = sshll.u32 %s232, 4
          %s241 = int_to_ptr.vmem [resolvable:$true] %s240
          %243 = dma.hbm_to_vmem [thread:$0]  %s239, 128, %s241, %s229
        $region36: #{tpu_custom_call.1} parent=27 // pred_fallthru
          _
      $region28: #{tpu_custom_call.1} parent=5 // pred_fallthru
        _
      %p244 = scmp.le.s32.totalorder 1, %s27
      %p245 = scmp.lt.s32.totalorder %s27, 5
      %p246 = pnand %p244, %p245
      %p247 = pneg %p246
      // Predicated region
      $region37: #{tpu_custom_call.1} parent=5 // pred_check
        _
      $region38: #{tpu_custom_call.1} parent=5 // pred_check_branch
        %249 = sbr.rel (%p246) target = $region40
      $region39: #{tpu_custom_call.1} parent=5 // pred_region
        %s250 = ssub.s32 %s27, 1
        %s251 = sand.u32 %s82, 1
        %s252 = scalar_lea.sflag [#allocation7], %s251
        %s253 = sand.u32 %s82, 1
        %s254 = smul.addr %s253, 8
        %s255 = scalar_lea.vmem [#allocation6], %s254
        // Predicated region
        $region41: #{tpu_custom_call.1} parent=39 // pred_check
          %p256 = pneg %p95
        $region42: #{tpu_custom_call.1} parent=39 // pred_check_branch
          %258 = sbr.rel (%p256) target = $region44
        $region43: #{tpu_custom_call.1} parent=39 // pred_region
          %260 = dma.done %s252, 128
        $region44: #{tpu_custom_call.1} parent=39 // pred_fallthru
          _
        %s261 = smul.u32 %s36, 2
        %s262 = sadd.s32 %s261, %s37
        %p263 = scmp.lt.s32.totalorder %s262, 3
        %s264 = scalar_select %p263, %s262, 3
        %s265 = smul.addr %s264, 8
        %s266 = scalar_lea.vmem %s1, %s265
        %p267 = pneg %p69
        %p268 = pneg %p66
        %s269 = sand.u32 %s82, 1
        %s270 = scalar_lea.sflag [#allocation7], %s269
        %s271 = sand.u32 %s82, 1
        %s272 = smul.addr %s271, 8
        %s273 = scalar_lea.vmem [#allocation6], %s272
        %p274 = pneg %p95
        %p275 = pneg %p92
        %p276 = pneg %p116
        %p277 = pneg %p113
        %p278 = pneg %p137
        %p279 = pneg %p134
        %p280 = pneg %p158
        %p281 = pneg %p155
        %p282 = pneg %p186
        %p283 = pneg %p183
        %s284 = sand.u32 %s173, 1
        %s285 = scalar_lea.sflag [#allocation8], %s284
        %s286 = sand.u32 %s173, 1
        %s287 = smul.addr %s286, 8
        %s288 = scalar_lea.vmem [#allocation9], %s287
        %s289 = smul.u32 %s36, 2
        %s290 = sadd.s32 %s289, %s37
        %p291 = scmp.lt.s32.totalorder %s290, 3
        %s292 = scalar_select %p291, %s290, 3
        %s293 = smul.addr %s292, 8
        %s294 = scalar_lea.vmem %s1, %s293
        %s295 = smul.u32 %s36, 2
        %s296 = sadd.s32 %s295, %s37
        %p297 = scmp.lt.s32.totalorder %s37, 0
        %s298 = ssub.s32 0, %s37
        %s299 = scalar_select %p297, %s298, %s37
        %s300 = sand.u32 %s299, 1
        %s301 = ssub.s32 0, %s300
        %s302 = scalar_select %p297, %s301, %s300
        %p303 = scmp.ne.s32.totalorder %s302, 0
        %p304 = scmp.lt.s32.totalorder %s302, 0
        %p305 = pnand %p304, %p303
        %p306 = pneg %p305
        %s307 = sadd.s32 %s302, 2
        %s308 = scalar_select %p306, %s307, %s302
        %p309 = scmp.eq.s32.totalorder %s37, 0
        // Predicated region
        $region45: #{tpu_custom_call.1} parent=39 // pred_check
          %p310 = pneg %p309
        $region46: #{tpu_custom_call.1} parent=39 // pred_check_branch
          %312 = sbr.rel (%p310) target = $region48
        $region47: #{tpu_custom_call.1} parent=39 // pred_region
          %s313 = smul.u32 %s36, 16
          %s314 = sld [smem:[#allocation5 + %s313]]
          %p315 = scmp.gt.s32.totalorder %s314, 0
          %s316 = scalar_select %p315, %s314, 0
          %p317 = scmp.lt.s32.totalorder %s316, 31
          %s318 = scalar_select %p317, %s316, 31
          %s319 = scalar_lea.vmem %s2, %s318
          // Predicated region
          $region49: #{tpu_custom_call.1} parent=47 // pred_check
            _
          $region50: #{tpu_custom_call.1} parent=47 // pred_check_branch
            %321 = sbr.rel target = $region52
          $region51: #{tpu_custom_call.1} parent=47 // pred_region
            // Predicated region
            $region64: #{tpu_custom_call.1} parent=51 // pred_check
              _
            $region65: #{tpu_custom_call.1} parent=51 // pred_check_branch
              %337 = sbr.rel (0) target = $region67
            $region66: #{tpu_custom_call.1} parent=51 // pred_region
              %s339 = ssub.s32 2, 1
              loop: start=0, step=1, limit=1
              $region68: #{tpu_custom_call.1} parent=66 // loop_pre_header
                _
              $region69: #{tpu_custom_call.1} parent=66 // loop_header
                %s341 = sphi 0, %s345
                %p342 = scmp.ge.s32.totalorder %s341, 1
                %s346 = sphi %s319, %s319
                %s347 = sphi [#allocation2], [#allocation2]
              $region70: #{tpu_custom_call.1} parent=66 // loop_header_branch
                %344 = sbr.rel (%p342) target = $region74
              $region71: #{tpu_custom_call.1} parent=66 // loop_body
                %v348 = vld [vmem:[%s346] sm:%s339]
                %349 = vst [vmem:[%s347] sm:%s339] %v348
              $region72: #{tpu_custom_call.1} parent=66 // loop_footer
                %s345 = sadd.s32 1, %s341
              $region73: #{tpu_custom_call.1} parent=66 // loop_footer_branch
                %340 = sbr.rel target = $region69
              $region74: #{tpu_custom_call.1} parent=66 // loop_exit
                _
            $region67: #{tpu_custom_call.1} parent=51 // pred_fallthru
              _
          $region52: #{tpu_custom_call.1} parent=47 // pred_fallthru
            _
          // Predicated region
          $region53: #{tpu_custom_call.1} parent=47 // pred_check
            _
          $region54: #{tpu_custom_call.1} parent=47 // pred_check_branch
            %323 = sbr.rel (0) target = $region56
          $region55: #{tpu_custom_call.1} parent=47 // pred_region
            %s325 = ssub.s32 2, 1
            loop: start=0, step=1, limit=1
            $region57: #{tpu_custom_call.1} parent=55 // loop_pre_header
              _
            $region58: #{tpu_custom_call.1} parent=55 // loop_header
              %s327 = sphi 0, %s331
              %p328 = scmp.ge.s32.totalorder %s327, 1
              %s332 = sphi %s319, %s319
              %s333 = sphi [#allocation2], [#allocation2]
            $region59: #{tpu_custom_call.1} parent=55 // loop_header_branch
              %330 = sbr.rel (%p328) target = $region63
            $region60: #{tpu_custom_call.1} parent=55 // loop_body
              %v334 = vld [vmem:[%s332] sm:%s325]
              %335 = vst [vmem:[%s333] sm:%s325] %v334
            $region61: #{tpu_custom_call.1} parent=55 // loop_footer
              %s331 = sadd.s32 1, %s327
            $region62: #{tpu_custom_call.1} parent=55 // loop_footer_branch
              %326 = sbr.rel target = $region58
            $region63: #{tpu_custom_call.1} parent=55 // loop_exit
              _
          $region56: #{tpu_custom_call.1} parent=47 // pred_fallthru
            _
          // Predicated region
          $region75: #{tpu_custom_call.1} parent=47 // pred_check
            _
          $region76: #{tpu_custom_call.1} parent=47 // pred_check_branch
            %352 = sbr.rel (0) target = $region78
          $region77: #{tpu_custom_call.1} parent=47 // pred_region
            %353 = vsyncadd [#allocation3], 16
          $region78: #{tpu_custom_call.1} parent=47 // pred_fallthru
            _
          %s354 = sadd.s32 %s313, 1
          %s355 = sld [smem:[#allocation5 + %s354]]
          %p356 = scmp.gt.s32.totalorder %s355, 0
          %s357 = scalar_select %p356, %s355, 0
          %p358 = scmp.lt.s32.totalorder %s357, 31
          %s359 = scalar_select %p358, %s357, 31
          %s360 = scalar_lea.vmem %s2, %s359
          %s361 = scalar_lea.vmem [#allocation2], 1
          %s362 = scalar_lea.sflag [#allocation3], 1
          // Predicated region
          $region79: #{tpu_custom_call.1} parent=47 // pred_check
            _
          $region80: #{tpu_custom_call.1} parent=47 // pred_check_branch
            %364 = sbr.rel target = $region82
          $region81: #{tpu_custom_call.1} parent=47 // pred_region
            // Predicated region
            $region94: #{tpu_custom_call.1} parent=81 // pred_check
              _
            $region95: #{tpu_custom_call.1} parent=81 // pred_check_branch
              %380 = sbr.rel (0) target = $region97
            $region96: #{tpu_custom_call.1} parent=81 // pred_region
              %s382 = ssub.s32 2, 1
              loop: start=0, step=1, limit=1
              $region98: #{tpu_custom_call.1} parent=96 // loop_pre_header
                _
              $region99: #{tpu_custom_call.1} parent=96 // loop_header
                %s384 = sphi 0, %s388
                %p385 = scmp.ge.s32.totalorder %s384, 1
                %s389 = sphi %s360, %s360
                %s390 = sphi %s361, %s361
              $region100: #{tpu_custom_call.1} parent=96 // loop_header_branch
                %387 = sbr.rel (%p385) target = $region104
              $region101: #{tpu_custom_call.1} parent=96 // loop_body
                %v391 = vld [vmem:[%s389] sm:%s382]
                %392 = vst [vmem:[%s390] sm:%s382] %v391
              $region102: #{tpu_custom_call.1} parent=96 // loop_footer
                %s388 = sadd.s32 1, %s384
              $region103: #{tpu_custom_call.1} parent=96 // loop_footer_branch
                %383 = sbr.rel target = $region99
              $region104: #{tpu_custom_call.1} parent=96 // loop_exit
                _
            $region97: #{tpu_custom_call.1} parent=81 // pred_fallthru
              _
          $region82: #{tpu_custom_call.1} parent=47 // pred_fallthru
            _
          // Predicated region
          $region83: #{tpu_custom_call.1} parent=47 // pred_check
            _
          $region84: #{tpu_custom_call.1} parent=47 // pred_check_branch
            %366 = sbr.rel (0) target = $region86
          $region85: #{tpu_custom_call.1} parent=47 // pred_region
            %s368 = ssub.s32 2, 1
            loop: start=0, step=1, limit=1
            $region87: #{tpu_custom_call.1} parent=85 // loop_pre_header
              _
            $region88: #{tpu_custom_call.1} parent=85 // loop_header
              %s370 = sphi 0, %s374
              %p371 = scmp.ge.s32.totalorder %s370, 1
              %s375 = sphi %s360, %s360
              %s376 = sphi %s361, %s361
            $region89: #{tpu_custom_call.1} parent=85 // loop_header_branch
              %373 = sbr.rel (%p371) target = $region93
            $region90: #{tpu_custom_call.1} parent=85 // loop_body
              %v377 = vld [vmem:[%s375] sm:%s368]
              %378 = vst [vmem:[%s376] sm:%s368] %v377
            $region91: #{tpu_custom_call.1} parent=85 // loop_footer
              %s374 = sadd.s32 1, %s370
            $region92: #{tpu_custom_call.1} parent=85 // loop_footer_branch
              %369 = sbr.rel target = $region88
            $region93: #{tpu_custom_call.1} parent=85 // loop_exit
              _
          $region86: #{tpu_custom_call.1} parent=47 // pred_fallthru
            _
          // Predicated region
          $region105: #{tpu_custom_call.1} parent=47 // pred_check
            _
          $region106: #{tpu_custom_call.1} parent=47 // pred_check_branch
            %395 = sbr.rel (0) target = $region108
          $region107: #{tpu_custom_call.1} parent=47 // pred_region
            %396 = vsyncadd %s362, 16
          $region108: #{tpu_custom_call.1} parent=47 // pred_fallthru
            _
          %s397 = sadd.s32 %s313, 2
          %s398 = sld [smem:[#allocation5 + %s397]]
          %p399 = scmp.gt.s32.totalorder %s398, 0
          %s400 = scalar_select %p399, %s398, 0
          %p401 = scmp.lt.s32.totalorder %s400, 31
          %s402 = scalar_select %p401, %s400, 31
          %s403 = scalar_lea.vmem %s2, %s402
          %s404 = scalar_lea.vmem [#allocation2], 2
          %s405 = scalar_lea.sflag [#allocation3], 2
          // Predicated region
          $region109: #{tpu_custom_call.1} parent=47 // pred_check
            _
          $region110: #{tpu_custom_call.1} parent=47 // pred_check_branch
            %407 = sbr.rel target = $region112
          $region111: #{tpu_custom_call.1} parent=47 // pred_region
            // Predicated region
            $region124: #{tpu_custom_call.1} parent=111 // pred_check
              _
            $region125: #{tpu_custom_call.1} parent=111 // pred_check_branch
              %423 = sbr.rel (0) target = $region127
            $region126: #{tpu_custom_call.1} parent=111 // pred_region
              %s425 = ssub.s32 2, 1
              loop: start=0, step=1, limit=1
              $region128: #{tpu_custom_call.1} parent=126 // loop_pre_header
                _
              $region129: #{tpu_custom_call.1} parent=126 // loop_header
                %s427 = sphi 0, %s431
                %p428 = scmp.ge.s32.totalorder %s427, 1
                %s432 = sphi %s403, %s403
                %s433 = sphi %s404, %s404
              $region130: #{tpu_custom_call.1} parent=126 // loop_header_branch
                %430 = sbr.rel (%p428) target = $region134
              $region131: #{tpu_custom_call.1} parent=126 // loop_body
                %v434 = vld [vmem:[%s432] sm:%s425]
                %435 = vst [vmem:[%s433] sm:%s425] %v434
              $region132: #{tpu_custom_call.1} parent=126 // loop_footer
                %s431 = sadd.s32 1, %s427
              $region133: #{tpu_custom_call.1} parent=126 // loop_footer_branch
                %426 = sbr.rel target = $region129
              $region134: #{tpu_custom_call.1} parent=126 // loop_exit
                _
            $region127: #{tpu_custom_call.1} parent=111 // pred_fallthru
              _
          $region112: #{tpu_custom_call.1} parent=47 // pred_fallthru
            _
          // Predicated region
          $region113: #{tpu_custom_call.1} parent=47 // pred_check
            _
          $region114: #{tpu_custom_call.1} parent=47 // pred_check_branch
            %409 = sbr.rel (0) target = $region116
          $region115: #{tpu_custom_call.1} parent=47 // pred_region
            %s411 = ssub.s32 2, 1
            loop: start=0, step=1, limit=1
            $region117: #{tpu_custom_call.1} parent=115 // loop_pre_header
              _
            $region118: #{tpu_custom_call.1} parent=115 // loop_header
              %s413 = sphi 0, %s417
              %p414 = scmp.ge.s32.totalorder %s413, 1
              %s418 = sphi %s403, %s403
              %s419 = sphi %s404, %s404
            $region119: #{tpu_custom_call.1} parent=115 // loop_header_branch
              %416 = sbr.rel (%p414) target = $region123
            $region120: #{tpu_custom_call.1} parent=115 // loop_body
              %v420 = vld [vmem:[%s418] sm:%s411]
              %421 = vst [vmem:[%s419] sm:%s411] %v420
            $region121: #{tpu_custom_call.1} parent=115 // loop_footer
              %s417 = sadd.s32 1, %s413
            $region122: #{tpu_custom_call.1} parent=115 // loop_footer_branch
              %412 = sbr.rel target = $region118
            $region123: #{tpu_custom_call.1} parent=115 // loop_exit
              _
          $region116: #{tpu_custom_call.1} parent=47 // pred_fallthru
            _
          // Predicated region
          $region135: #{tpu_custom_call.1} parent=47 // pred_check
            _
          $region136: #{tpu_custom_call.1} parent=47 // pred_check_branch
            %438 = sbr.rel (0) target = $region138
          $region137: #{tpu_custom_call.1} parent=47 // pred_region
            %439 = vsyncadd %s405, 16
          $region138: #{tpu_custom_call.1} parent=47 // pred_fallthru
            _
          %s440 = sadd.s32 %s313, 3
          %s441 = sld [smem:[#allocation5 + %s440]]
          %p442 = scmp.gt.s32.totalorder %s441, 0
          %s443 = scalar_select %p442, %s441, 0
          %p444 = scmp.lt.s32.totalorder %s443, 31
          %s445 = scalar_select %p444, %s443, 31
          %s446 = scalar_lea.vmem %s2, %s445
          %s447 = scalar_lea.vmem [#allocation2], 3
          %s448 = scalar_lea.sflag [#allocation3], 3
          // Predicated region
          $region139: #{tpu_custom_call.1} parent=47 // pred_check
            _
          $region140: #{tpu_custom_call.1} parent=47 // pred_check_branch
            %450 = sbr.rel target = $region142
          $region141: #{tpu_custom_call.1} parent=47 // pred_region
            // Predicated region
            $region154: #{tpu_custom_call.1} parent=141 // pred_check
              _
            $region155: #{tpu_custom_call.1} parent=141 // pred_check_branch
              %466 = sbr.rel (0) target = $region157
            $region156: #{tpu_custom_call.1} parent=141 // pred_region
              %s468 = ssub.s32 2, 1
              loop: start=0, step=1, limit=1
              $region158: #{tpu_custom_call.1} parent=156 // loop_pre_header
                _
              $region159: #{tpu_custom_call.1} parent=156 // loop_header
                %s470 = sphi 0, %s474
                %p471 = scmp.ge.s32.totalorder %s470, 1
                %s475 = sphi %s446, %s446
                %s476 = sphi %s447, %s447
              $region160: #{tpu_custom_call.1} parent=156 // loop_header_branch
                %473 = sbr.rel (%p471) target = $region164
              $region161: #{tpu_custom_call.1} parent=156 // loop_body
                %v477 = vld [vmem:[%s475] sm:%s468]
                %478 = vst [vmem:[%s476] sm:%s468] %v477
              $region162: #{tpu_custom_call.1} parent=156 // loop_footer
                %s474 = sadd.s32 1, %s470
              $region163: #{tpu_custom_call.1} parent=156 // loop_footer_branch
                %469 = sbr.rel target = $region159
              $region164: #{tpu_custom_call.1} parent=156 // loop_exit
                _
            $region157: #{tpu_custom_call.1} parent=141 // pred_fallthru
              _
          $region142: #{tpu_custom_call.1} parent=47 // pred_fallthru
            _
          // Predicated region
          $region143: #{tpu_custom_call.1} parent=47 // pred_check
            _
          $region144: #{tpu_custom_call.1} parent=47 // pred_check_branch
            %452 = sbr.rel (0) target = $region146
          $region145: #{tpu_custom_call.1} parent=47 // pred_region
            %s454 = ssub.s32 2, 1
            loop: start=0, step=1, limit=1
            $region147: #{tpu_custom_call.1} parent=145 // loop_pre_header
              _
            $region148: #{tpu_custom_call.1} parent=145 // loop_header
              %s456 = sphi 0, %s460
              %p457 = scmp.ge.s32.totalorder %s456, 1
              %s461 = sphi %s446, %s446
              %s462 = sphi %s447, %s447
            $region149: #{tpu_custom_call.1} parent=145 // loop_header_branch
              %459 = sbr.rel (%p457) target = $region153
            $region150: #{tpu_custom_call.1} parent=145 // loop_body
              %v463 = vld [vmem:[%s461] sm:%s454]
              %464 = vst [vmem:[%s462] sm:%s454] %v463
            $region151: #{tpu_custom_call.1} parent=145 // loop_footer
              %s460 = sadd.s32 1, %s456
            $region152: #{tpu_custom_call.1} parent=145 // loop_footer_branch
              %455 = sbr.rel target = $region148
            $region153: #{tpu_custom_call.1} parent=145 // loop_exit
              _
          $region146: #{tpu_custom_call.1} parent=47 // pred_fallthru
            _
          // Predicated region
          $region165: #{tpu_custom_call.1} parent=47 // pred_check
            _
          $region166: #{tpu_custom_call.1} parent=47 // pred_check_branch
            %481 = sbr.rel (0) target = $region168
          $region167: #{tpu_custom_call.1} parent=47 // pred_region
            %482 = vsyncadd %s448, 16
          $region168: #{tpu_custom_call.1} parent=47 // pred_fallthru
            _
          %s483 = sadd.s32 %s313, 4
          %s484 = sld [smem:[#allocation5 + %s483]]
          %p485 = scmp.gt.s32.totalorder %s484, 0
          %s486 = scalar_select %p485, %s484, 0
          %p487 = scmp.lt.s32.totalorder %s486, 31
          %s488 = scalar_select %p487, %s486, 31
          %s489 = scalar_lea.vmem %s2, %s488
          %s490 = scalar_lea.vmem [#allocation2], 4
          %s491 = scalar_lea.sflag [#allocation3], 4
          // Predicated region
          $region169: #{tpu_custom_call.1} parent=47 // pred_check
            _
          $region170: #{tpu_custom_call.1} parent=47 // pred_check_branch
            %493 = sbr.rel target = $region172
          $region171: #{tpu_custom_call.1} parent=47 // pred_region
            // Predicated region
            $region184: #{tpu_custom_call.1} parent=171 // pred_check
              _
            $region185: #{tpu_custom_call.1} parent=171 // pred_check_branch
              %509 = sbr.rel (0) target = $region187
            $region186: #{tpu_custom_call.1} parent=171 // pred_region
              %s511 = ssub.s32 2, 1
              loop: start=0, step=1, limit=1
              $region188: #{tpu_custom_call.1} parent=186 // loop_pre_header
                _
              $region189: #{tpu_custom_call.1} parent=186 // loop_header
                %s513 = sphi 0, %s517
                %p514 = scmp.ge.s32.totalorder %s513, 1
                %s518 = sphi %s489, %s489
                %s519 = sphi %s490, %s490
              $region190: #{tpu_custom_call.1} parent=186 // loop_header_branch
                %516 = sbr.rel (%p514) target = $region194
              $region191: #{tpu_custom_call.1} parent=186 // loop_body
                %v520 = vld [vmem:[%s518] sm:%s511]
                %521 = vst [vmem:[%s519] sm:%s511] %v520
              $region192: #{tpu_custom_call.1} parent=186 // loop_footer
                %s517 = sadd.s32 1, %s513
              $region193: #{tpu_custom_call.1} parent=186 // loop_footer_branch
                %512 = sbr.rel target = $region189
              $region194: #{tpu_custom_call.1} parent=186 // loop_exit
                _
            $region187: #{tpu_custom_call.1} parent=171 // pred_fallthru
              _
          $region172: #{tpu_custom_call.1} parent=47 // pred_fallthru
            _
          // Predicated region
          $region173: #{tpu_custom_call.1} parent=47 // pred_check
            _
          $region174: #{tpu_custom_call.1} parent=47 // pred_check_branch
            %495 = sbr.rel (0) target = $region176
          $region175: #{tpu_custom_call.1} parent=47 // pred_region
            %s497 = ssub.s32 2, 1
            loop: start=0, step=1, limit=1
            $region177: #{tpu_custom_call.1} parent=175 // loop_pre_header
              _
            $region178: #{tpu_custom_call.1} parent=175 // loop_header
              %s499 = sphi 0, %s503
              %p500 = scmp.ge.s32.totalorder %s499, 1
              %s504 = sphi %s489, %s489
              %s505 = sphi %s490, %s490
            $region179: #{tpu_custom_call.1} parent=175 // loop_header_branch
              %502 = sbr.rel (%p500) target = $region183
            $region180: #{tpu_custom_call.1} parent=175 // loop_body
              %v506 = vld [vmem:[%s504] sm:%s497]
              %507 = vst [vmem:[%s505] sm:%s497] %v506
            $region181: #{tpu_custom_call.1} parent=175 // loop_footer
              %s503 = sadd.s32 1, %s499
            $region182: #{tpu_custom_call.1} parent=175 // loop_footer_branch
              %498 = sbr.rel target = $region178
            $region183: #{tpu_custom_call.1} parent=175 // loop_exit
              _
          $region176: #{tpu_custom_call.1} parent=47 // pred_fallthru
            _
          // Predicated region
          $region195: #{tpu_custom_call.1} parent=47 // pred_check
            _
          $region196: #{tpu_custom_call.1} parent=47 // pred_check_branch
            %524 = sbr.rel (0) target = $region198
          $region197: #{tpu_custom_call.1} parent=47 // pred_region
            %525 = vsyncadd %s491, 16
          $region198: #{tpu_custom_call.1} parent=47 // pred_fallthru
            _
          %s526 = sadd.s32 %s313, 5
          %s527 = sld [smem:[#allocation5 + %s526]]
          %p528 = scmp.gt.s32.totalorder %s527, 0
          %s529 = scalar_select %p528, %s527, 0
          %p530 = scmp.lt.s32.totalorder %s529, 31
          %s531 = scalar_select %p530, %s529, 31
          %s532 = scalar_lea.vmem %s2, %s531
          %s533 = scalar_lea.vmem [#allocation2], 5
          %s534 = scalar_lea.sflag [#allocation3], 5
          // Predicated region
          $region199: #{tpu_custom_call.1} parent=47 // pred_check
            _
          $region200: #{tpu_custom_call.1} parent=47 // pred_check_branch
            %536 = sbr.rel target = $region202
          $region201: #{tpu_custom_call.1} parent=47 // pred_region
            // Predicated region
            $region214: #{tpu_custom_call.1} parent=201 // pred_check
              _
            $region215: #{tpu_custom_call.1} parent=201 // pred_check_branch
              %552 = sbr.rel (0) target = $region217
            $region216: #{tpu_custom_call.1} parent=201 // pred_region
              %s554 = ssub.s32 2, 1
              loop: start=0, step=1, limit=1
              $region218: #{tpu_custom_call.1} parent=216 // loop_pre_header
                _
              $region219: #{tpu_custom_call.1} parent=216 // loop_header
                %s556 = sphi 0, %s560
                %p557 = scmp.ge.s32.totalorder %s556, 1
                %s561 = sphi %s532, %s532
                %s562 = sphi %s533, %s533
              $region220: #{tpu_custom_call.1} parent=216 // loop_header_branch
                %559 = sbr.rel (%p557) target = $region224
              $region221: #{tpu_custom_call.1} parent=216 // loop_body
                %v563 = vld [vmem:[%s561] sm:%s554]
                %564 = vst [vmem:[%s562] sm:%s554] %v563
              $region222: #{tpu_custom_call.1} parent=216 // loop_footer
                %s560 = sadd.s32 1, %s556
              $region223: #{tpu_custom_call.1} parent=216 // loop_footer_branch
                %555 = sbr.rel target = $region219
              $region224: #{tpu_custom_call.1} parent=216 // loop_exit
                _
            $region217: #{tpu_custom_call.1} parent=201 // pred_fallthru
              _
          $region202: #{tpu_custom_call.1} parent=47 // pred_fallthru
            _
          // Predicated region
          $region203: #{tpu_custom_call.1} parent=47 // pred_check
            _
          $region204: #{tpu_custom_call.1} parent=47 // pred_check_branch
            %538 = sbr.rel (0) target = $region206
          $region205: #{tpu_custom_call.1} parent=47 // pred_region
            %s540 = ssub.s32 2, 1
            loop: start=0, step=1, limit=1
            $region207: #{tpu_custom_call.1} parent=205 // loop_pre_header
              _
            $region208: #{tpu_custom_call.1} parent=205 // loop_header
              %s542 = sphi 0, %s546
              %p543 = scmp.ge.s32.totalorder %s542, 1
              %s547 = sphi %s532, %s532
              %s548 = sphi %s533, %s533
            $region209: #{tpu_custom_call.1} parent=205 // loop_header_branch
              %545 = sbr.rel (%p543) target = $region213
            $region210: #{tpu_custom_call.1} parent=205 // loop_body
              %v549 = vld [vmem:[%s547] sm:%s540]
              %550 = vst [vmem:[%s548] sm:%s540] %v549
            $region211: #{tpu_custom_call.1} parent=205 // loop_footer
              %s546 = sadd.s32 1, %s542
            $region212: #{tpu_custom_call.1} parent=205 // loop_footer_branch
              %541 = sbr.rel target = $region208
            $region213: #{tpu_custom_call.1} parent=205 // loop_exit
              _
          $region206: #{tpu_custom_call.1} parent=47 // pred_fallthru
            _
          // Predicated region
          $region225: #{tpu_custom_call.1} parent=47 // pred_check
            _
          $region226: #{tpu_custom_call.1} parent=47 // pred_check_branch
            %567 = sbr.rel (0) target = $region228
          $region227: #{tpu_custom_call.1} parent=47 // pred_region
            %568 = vsyncadd %s534, 16
          $region228: #{tpu_custom_call.1} parent=47 // pred_fallthru
            _
          %s569 = sadd.s32 %s313, 6
          %s570 = sld [smem:[#allocation5 + %s569]]
          %p571 = scmp.gt.s32.totalorder %s570, 0
          %s572 = scalar_select %p571, %s570, 0
          %p573 = scmp.lt.s32.totalorder %s572, 31
          %s574 = scalar_select %p573, %s572, 31
          %s575 = scalar_lea.vmem %s2, %s574
          %s576 = scalar_lea.vmem [#allocation2], 6
          %s577 = scalar_lea.sflag [#allocation3], 6
          // Predicated region
          $region229: #{tpu_custom_call.1} parent=47 // pred_check
            _
          $region230: #{tpu_custom_call.1} parent=47 // pred_check_branch
            %579 = sbr.rel target = $region232
          $region231: #{tpu_custom_call.1} parent=47 // pred_region
            // Predicated region
            $region244: #{tpu_custom_call.1} parent=231 // pred_check
              _
            $region245: #{tpu_custom_call.1} parent=231 // pred_check_branch
              %595 = sbr.rel (0) target = $region247
            $region246: #{tpu_custom_call.1} parent=231 // pred_region
              %s597 = ssub.s32 2, 1
              loop: start=0, step=1, limit=1
              $region248: #{tpu_custom_call.1} parent=246 // loop_pre_header
                _
              $region249: #{tpu_custom_call.1} parent=246 // loop_header
                %s599 = sphi 0, %s603
                %p600 = scmp.ge.s32.totalorder %s599, 1
                %s604 = sphi %s575, %s575
                %s605 = sphi %s576, %s576
              $region250: #{tpu_custom_call.1} parent=246 // loop_header_branch
                %602 = sbr.rel (%p600) target = $region254
              $region251: #{tpu_custom_call.1} parent=246 // loop_body
                %v606 = vld [vmem:[%s604] sm:%s597]
                %607 = vst [vmem:[%s605] sm:%s597] %v606
              $region252: #{tpu_custom_call.1} parent=246 // loop_footer
                %s603 = sadd.s32 1, %s599
              $region253: #{tpu_custom_call.1} parent=246 // loop_footer_branch
                %598 = sbr.rel target = $region249
              $region254: #{tpu_custom_call.1} parent=246 // loop_exit
                _
            $region247: #{tpu_custom_call.1} parent=231 // pred_fallthru
              _
          $region232: #{tpu_custom_call.1} parent=47 // pred_fallthru
            _
          // Predicated region
          $region233: #{tpu_custom_call.1} parent=47 // pred_check
            _
          $region234: #{tpu_custom_call.1} parent=47 // pred_check_branch
            %581 = sbr.rel (0) target = $region236
          $region235: #{tpu_custom_call.1} parent=47 // pred_region
            %s583 = ssub.s32 2, 1
            loop: start=0, step=1, limit=1
            $region237: #{tpu_custom_call.1} parent=235 // loop_pre_header
              _
            $region238: #{tpu_custom_call.1} parent=235 // loop_header
              %s585 = sphi 0, %s589
              %p586 = scmp.ge.s32.totalorder %s585, 1
              %s590 = sphi %s575, %s575
              %s591 = sphi %s576, %s576
            $region239: #{tpu_custom_call.1} parent=235 // loop_header_branch
              %588 = sbr.rel (%p586) target = $region243
            $region240: #{tpu_custom_call.1} parent=235 // loop_body
              %v592 = vld [vmem:[%s590] sm:%s583]
              %593 = vst [vmem:[%s591] sm:%s583] %v592
            $region241: #{tpu_custom_call.1} parent=235 // loop_footer
              %s589 = sadd.s32 1, %s585
            $region242: #{tpu_custom_call.1} parent=235 // loop_footer_branch
              %584 = sbr.rel target = $region238
            $region243: #{tpu_custom_call.1} parent=235 // loop_exit
              _
          $region236: #{tpu_custom_call.1} parent=47 // pred_fallthru
            _
          // Predicated region
          $region255: #{tpu_custom_call.1} parent=47 // pred_check
            _
          $region256: #{tpu_custom_call.1} parent=47 // pred_check_branch
            %610 = sbr.rel (0) target = $region258
          $region257: #{tpu_custom_call.1} parent=47 // pred_region
            %611 = vsyncadd %s577, 16
          $region258: #{tpu_custom_call.1} parent=47 // pred_fallthru
            _
          %s612 = sadd.s32 %s313, 7
          %s613 = sld [smem:[#allocation5 + %s612]]
          %p614 = scmp.gt.s32.totalorder %s613, 0
          %s615 = scalar_select %p614, %s613, 0
          %p616 = scmp.lt.s32.totalorder %s615, 31
          %s617 = scalar_select %p616, %s615, 31
          %s618 = scalar_lea.vmem %s2, %s617
          %s619 = scalar_lea.vmem [#allocation2], 7
          %s620 = scalar_lea.sflag [#allocation3], 7
          // Predicated region
          $region259: #{tpu_custom_call.1} parent=47 // pred_check
            _
          $region260: #{tpu_custom_call.1} parent=47 // pred_check_branch
            %622 = sbr.rel target = $region262
          $region261: #{tpu_custom_call.1} parent=47 // pred_region
            // Predicated region
            $region274: #{tpu_custom_call.1} parent=261 // pred_check
              _
            $region275: #{tpu_custom_call.1} parent=261 // pred_check_branch
              %638 = sbr.rel (0) target = $region277
            $region276: #{tpu_custom_call.1} parent=261 // pred_region
              %s640 = ssub.s32 2, 1
              loop: start=0, step=1, limit=1
              $region278: #{tpu_custom_call.1} parent=276 // loop_pre_header
                _
              $region279: #{tpu_custom_call.1} parent=276 // loop_header
                %s642 = sphi 0, %s646
                %p643 = scmp.ge.s32.totalorder %s642, 1
                %s647 = sphi %s618, %s618
                %s648 = sphi %s619, %s619
              $region280: #{tpu_custom_call.1} parent=276 // loop_header_branch
                %645 = sbr.rel (%p643) target = $region284
              $region281: #{tpu_custom_call.1} parent=276 // loop_body
                %v649 = vld [vmem:[%s647] sm:%s640]
                %650 = vst [vmem:[%s648] sm:%s640] %v649
              $region282: #{tpu_custom_call.1} parent=276 // loop_footer
                %s646 = sadd.s32 1, %s642
              $region283: #{tpu_custom_call.1} parent=276 // loop_footer_branch
                %641 = sbr.rel target = $region279
              $region284: #{tpu_custom_call.1} parent=276 // loop_exit
                _
            $region277: #{tpu_custom_call.1} parent=261 // pred_fallthru
              _
          $region262: #{tpu_custom_call.1} parent=47 // pred_fallthru
            _
          // Predicated region
          $region263: #{tpu_custom_call.1} parent=47 // pred_check
            _
          $region264: #{tpu_custom_call.1} parent=47 // pred_check_branch
            %624 = sbr.rel (0) target = $region266
          $region265: #{tpu_custom_call.1} parent=47 // pred_region
            %s626 = ssub.s32 2, 1
            loop: start=0, step=1, limit=1
            $region267: #{tpu_custom_call.1} parent=265 // loop_pre_header
              _
            $region268: #{tpu_custom_call.1} parent=265 // loop_header
              %s628 = sphi 0, %s632
              %p629 = scmp.ge.s32.totalorder %s628, 1
              %s633 = sphi %s618, %s618
              %s634 = sphi %s619, %s619
            $region269: #{tpu_custom_call.1} parent=265 // loop_header_branch
              %631 = sbr.rel (%p629) target = $region273
            $region270: #{tpu_custom_call.1} parent=265 // loop_body
              %v635 = vld [vmem:[%s633] sm:%s626]
              %636 = vst [vmem:[%s634] sm:%s626] %v635
            $region271: #{tpu_custom_call.1} parent=265 // loop_footer
              %s632 = sadd.s32 1, %s628
            $region272: #{tpu_custom_call.1} parent=265 // loop_footer_branch
              %627 = sbr.rel target = $region268
            $region273: #{tpu_custom_call.1} parent=265 // loop_exit
              _
          $region266: #{tpu_custom_call.1} parent=47 // pred_fallthru
            _
          // Predicated region
          $region285: #{tpu_custom_call.1} parent=47 // pred_check
            _
          $region286: #{tpu_custom_call.1} parent=47 // pred_check_branch
            %653 = sbr.rel (0) target = $region288
          $region287: #{tpu_custom_call.1} parent=47 // pred_region
            %654 = vsyncadd %s620, 16
          $region288: #{tpu_custom_call.1} parent=47 // pred_fallthru
            _
        $region48: #{tpu_custom_call.1} parent=39 // pred_fallthru
          _
        %s655 = sadd.s32 %s37, 1
        %p656 = scmp.lt.s32.totalorder %s655, 2
        // Predicated region
        $region289: #{tpu_custom_call.1} parent=39 // pred_check
          %p657 = pneg %p656
        $region290: #{tpu_custom_call.1} parent=39 // pred_check_branch
          %659 = sbr.rel (%p657) target = $region292
        $region291: #{tpu_custom_call.1} parent=39 // pred_region
          %p660 = scmp.lt.s32.totalorder %s655, 0
          %s661 = ssub.s32 0, %s655
          %s662 = scalar_select %p660, %s661, %s655
          %s663 = sand.u32 %s662, 1
          %s664 = ssub.s32 0, %s663
          %s665 = scalar_select %p660, %s664, %s663
          %p666 = scmp.ne.s32.totalorder %s665, 0
          %p667 = scmp.lt.s32.totalorder %s665, 0
          %p668 = pnand %p667, %p666
          %p669 = pneg %p668
          %s670 = sadd.s32 %s665, 2
          %s671 = scalar_select %p669, %s670, %s665
          %s672 = smul.u32 %s36, 2
          %s673 = sadd.s32 %s672, %s655
          %s674 = smul.u32 %s673, 8
          %s675 = smul.u32 %s671, 8
          %s676 = sld [smem:[#allocation5 + %s674]]
          %p677 = scmp.gt.s32.totalorder %s676, 0
          %s678 = scalar_select %p677, %s676, 0
          %p679 = scmp.lt.s32.totalorder %s678, 31
          %s680 = scalar_select %p679, %s678, 31
          %s681 = scalar_lea.vmem %s2, %s680
          %s682 = scalar_lea.vmem [#allocation2], %s675
          %s683 = scalar_lea.sflag [#allocation3], %s675
          // Predicated region
          $region293: #{tpu_custom_call.1} parent=291 // pred_check
            _
          $region294: #{tpu_custom_call.1} parent=291 // pred_check_branch
            %685 = sbr.rel target = $region296
          $region295: #{tpu_custom_call.1} parent=291 // pred_region
            // Predicated region
            $region308: #{tpu_custom_call.1} parent=295 // pred_check
              _
            $region309: #{tpu_custom_call.1} parent=295 // pred_check_branch
              %701 = sbr.rel (0) target = $region311
            $region310: #{tpu_custom_call.1} parent=295 // pred_region
              %s703 = ssub.s32 2, 1
              loop: start=0, step=1, limit=1
              $region312: #{tpu_custom_call.1} parent=310 // loop_pre_header
                _
              $region313: #{tpu_custom_call.1} parent=310 // loop_header
                %s705 = sphi 0, %s709
                %p706 = scmp.ge.s32.totalorder %s705, 1
                %s710 = sphi %s681, %s681
                %s711 = sphi %s682, %s682
              $region314: #{tpu_custom_call.1} parent=310 // loop_header_branch
                %708 = sbr.rel (%p706) target = $region318
              $region315: #{tpu_custom_call.1} parent=310 // loop_body
                %v712 = vld [vmem:[%s710] sm:%s703]
                %713 = vst [vmem:[%s711] sm:%s703] %v712
              $region316: #{tpu_custom_call.1} parent=310 // loop_footer
                %s709 = sadd.s32 1, %s705
              $region317: #{tpu_custom_call.1} parent=310 // loop_footer_branch
                %704 = sbr.rel target = $region313
              $region318: #{tpu_custom_call.1} parent=310 // loop_exit
                _
            $region311: #{tpu_custom_call.1} parent=295 // pred_fallthru
              _
          $region296: #{tpu_custom_call.1} parent=291 // pred_fallthru
            _
          // Predicated region
          $region297: #{tpu_custom_call.1} parent=291 // pred_check
            _
          $region298: #{tpu_custom_call.1} parent=291 // pred_check_branch
            %687 = sbr.rel (0) target = $region300
          $region299: #{tpu_custom_call.1} parent=291 // pred_region
            %s689 = ssub.s32 2, 1
            loop: start=0, step=1, limit=1
            $region301: #{tpu_custom_call.1} parent=299 // loop_pre_header
              _
            $region302: #{tpu_custom_call.1} parent=299 // loop_header
              %s691 = sphi 0, %s695
              %p692 = scmp.ge.s32.totalorder %s691, 1
              %s696 = sphi %s681, %s681
              %s697 = sphi %s682, %s682
            $region303: #{tpu_custom_call.1} parent=299 // loop_header_branch
              %694 = sbr.rel (%p692) target = $region307
            $region304: #{tpu_custom_call.1} parent=299 // loop_body
              %v698 = vld [vmem:[%s696] sm:%s689]
              %699 = vst [vmem:[%s697] sm:%s689] %v698
            $region305: #{tpu_custom_call.1} parent=299 // loop_footer
              %s695 = sadd.s32 1, %s691
            $region306: #{tpu_custom_call.1} parent=299 // loop_footer_branch
              %690 = sbr.rel target = $region302
            $region307: #{tpu_custom_call.1} parent=299 // loop_exit
              _
          $region300: #{tpu_custom_call.1} parent=291 // pred_fallthru
            _
          // Predicated region
          $region319: #{tpu_custom_call.1} parent=291 // pred_check
            _
          $region320: #{tpu_custom_call.1} parent=291 // pred_check_branch
            %716 = sbr.rel (0) target = $region322
          $region321: #{tpu_custom_call.1} parent=291 // pred_region
            %717 = vsyncadd %s683, 16
          $region322: #{tpu_custom_call.1} parent=291 // pred_fallthru
            _
          %s718 = sadd.s32 %s674, 1
          %s719 = sld [smem:[#allocation5 + %s718]]
          %p720 = scmp.gt.s32.totalorder %s719, 0
          %s721 = scalar_select %p720, %s719, 0
          %p722 = scmp.lt.s32.totalorder %s721, 31
          %s723 = scalar_select %p722, %s721, 31
          %s724 = sadd.s32 %s675, 1
          %s725 = scalar_lea.vmem %s2, %s723
          %s726 = scalar_lea.vmem [#allocation2], %s724
          %s727 = scalar_lea.sflag [#allocation3], %s724
          // Predicated region
          $region323: #{tpu_custom_call.1} parent=291 // pred_check
            _
          $region324: #{tpu_custom_call.1} parent=291 // pred_check_branch
            %729 = sbr.rel target = $region326
          $region325: #{tpu_custom_call.1} parent=291 // pred_region
            // Predicated region
            $region338: #{tpu_custom_call.1} parent=325 // pred_check
              _
            $region339: #{tpu_custom_call.1} parent=325 // pred_check_branch
              %745 = sbr.rel (0) target = $region341
            $region340: #{tpu_custom_call.1} parent=325 // pred_region
              %s747 = ssub.s32 2, 1
              loop: start=0, step=1, limit=1
              $region342: #{tpu_custom_call.1} parent=340 // loop_pre_header
                _
              $region343: #{tpu_custom_call.1} parent=340 // loop_header
                %s749 = sphi 0, %s753
                %p750 = scmp.ge.s32.totalorder %s749, 1
                %s754 = sphi %s725, %s725
                %s755 = sphi %s726, %s726
              $region344: #{tpu_custom_call.1} parent=340 // loop_header_branch
                %752 = sbr.rel (%p750) target = $region348
              $region345: #{tpu_custom_call.1} parent=340 // loop_body
                %v756 = vld [vmem:[%s754] sm:%s747]
                %757 = vst [vmem:[%s755] sm:%s747] %v756
              $region346: #{tpu_custom_call.1} parent=340 // loop_footer
                %s753 = sadd.s32 1, %s749
              $region347: #{tpu_custom_call.1} parent=340 // loop_footer_branch
                %748 = sbr.rel target = $region343
              $region348: #{tpu_custom_call.1} parent=340 // loop_exit
                _
            $region341: #{tpu_custom_call.1} parent=325 // pred_fallthru
              _
          $region326: #{tpu_custom_call.1} parent=291 // pred_fallthru
            _
          // Predicated region
          $region327: #{tpu_custom_call.1} parent=291 // pred_check
            _
          $region328: #{tpu_custom_call.1} parent=291 // pred_check_branch
            %731 = sbr.rel (0) target = $region330
          $region329: #{tpu_custom_call.1} parent=291 // pred_region
            %s733 = ssub.s32 2, 1
            loop: start=0, step=1, limit=1
            $region331: #{tpu_custom_call.1} parent=329 // loop_pre_header
              _
            $region332: #{tpu_custom_call.1} parent=329 // loop_header
              %s735 = sphi 0, %s739
              %p736 = scmp.ge.s32.totalorder %s735, 1
              %s740 = sphi %s725, %s725
              %s741 = sphi %s726, %s726
            $region333: #{tpu_custom_call.1} parent=329 // loop_header_branch
              %738 = sbr.rel (%p736) target = $region337
            $region334: #{tpu_custom_call.1} parent=329 // loop_body
              %v742 = vld [vmem:[%s740] sm:%s733]
              %743 = vst [vmem:[%s741] sm:%s733] %v742
            $region335: #{tpu_custom_call.1} parent=329 // loop_footer
              %s739 = sadd.s32 1, %s735
            $region336: #{tpu_custom_call.1} parent=329 // loop_footer_branch
              %734 = sbr.rel target = $region332
            $region337: #{tpu_custom_call.1} parent=329 // loop_exit
              _
          $region330: #{tpu_custom_call.1} parent=291 // pred_fallthru
            _
          // Predicated region
          $region349: #{tpu_custom_call.1} parent=291 // pred_check
            _
          $region350: #{tpu_custom_call.1} parent=291 // pred_check_branch
            %760 = sbr.rel (0) target = $region352
          $region351: #{tpu_custom_call.1} parent=291 // pred_region
            %761 = vsyncadd %s727, 16
          $region352: #{tpu_custom_call.1} parent=291 // pred_fallthru
            _
          %s762 = sadd.s32 %s674, 2
          %s763 = sld [smem:[#allocation5 + %s762]]
          %p764 = scmp.gt.s32.totalorder %s763, 0
          %s765 = scalar_select %p764, %s763, 0
          %p766 = scmp.lt.s32.totalorder %s765, 31
          %s767 = scalar_select %p766, %s765, 31
          %s768 = sadd.s32 %s675, 2
          %s769 = scalar_lea.vmem %s2, %s767
          %s770 = scalar_lea.vmem [#allocation2], %s768
          %s771 = scalar_lea.sflag [#allocation3], %s768
          // Predicated region
          $region353: #{tpu_custom_call.1} parent=291 // pred_check
            _
          $region354: #{tpu_custom_call.1} parent=291 // pred_check_branch
            %773 = sbr.rel target = $region356
          $region355: #{tpu_custom_call.1} parent=291 // pred_region
            // Predicated region
            $region368: #{tpu_custom_call.1} parent=355 // pred_check
              _
            $region369: #{tpu_custom_call.1} parent=355 // pred_check_branch
              %789 = sbr.rel (0) target = $region371
            $region370: #{tpu_custom_call.1} parent=355 // pred_region
              %s791 = ssub.s32 2, 1
              loop: start=0, step=1, limit=1
              $region372: #{tpu_custom_call.1} parent=370 // loop_pre_header
                _
              $region373: #{tpu_custom_call.1} parent=370 // loop_header
                %s793 = sphi 0, %s797
                %p794 = scmp.ge.s32.totalorder %s793, 1
                %s798 = sphi %s769, %s769
                %s799 = sphi %s770, %s770
              $region374: #{tpu_custom_call.1} parent=370 // loop_header_branch
                %796 = sbr.rel (%p794) target = $region378
              $region375: #{tpu_custom_call.1} parent=370 // loop_body
                %v800 = vld [vmem:[%s798] sm:%s791]
                %801 = vst [vmem:[%s799] sm:%s791] %v800
              $region376: #{tpu_custom_call.1} parent=370 // loop_footer
                %s797 = sadd.s32 1, %s793
              $region377: #{tpu_custom_call.1} parent=370 // loop_footer_branch
                %792 = sbr.rel target = $region373
              $region378: #{tpu_custom_call.1} parent=370 // loop_exit
                _
            $region371: #{tpu_custom_call.1} parent=355 // pred_fallthru
              _
          $region356: #{tpu_custom_call.1} parent=291 // pred_fallthru
            _
          // Predicated region
          $region357: #{tpu_custom_call.1} parent=291 // pred_check
            _
          $region358: #{tpu_custom_call.1} parent=291 // pred_check_branch
            %775 = sbr.rel (0) target = $region360
          $region359: #{tpu_custom_call.1} parent=291 // pred_region
            %s777 = ssub.s32 2, 1
            loop: start=0, step=1, limit=1
            $region361: #{tpu_custom_call.1} parent=359 // loop_pre_header
              _
            $region362: #{tpu_custom_call.1} parent=359 // loop_header
              %s779 = sphi 0, %s783
              %p780 = scmp.ge.s32.totalorder %s779, 1
              %s784 = sphi %s769, %s769
              %s785 = sphi %s770, %s770
            $region363: #{tpu_custom_call.1} parent=359 // loop_header_branch
              %782 = sbr.rel (%p780) target = $region367
            $region364: #{tpu_custom_call.1} parent=359 // loop_body
              %v786 = vld [vmem:[%s784] sm:%s777]
              %787 = vst [vmem:[%s785] sm:%s777] %v786
            $region365: #{tpu_custom_call.1} parent=359 // loop_footer
              %s783 = sadd.s32 1, %s779
            $region366: #{tpu_custom_call.1} parent=359 // loop_footer_branch
              %778 = sbr.rel target = $region362
            $region367: #{tpu_custom_call.1} parent=359 // loop_exit
              _
          $region360: #{tpu_custom_call.1} parent=291 // pred_fallthru
            _
          // Predicated region
          $region379: #{tpu_custom_call.1} parent=291 // pred_check
            _
          $region380: #{tpu_custom_call.1} parent=291 // pred_check_branch
            %804 = sbr.rel (0) target = $region382
          $region381: #{tpu_custom_call.1} parent=291 // pred_region
            %805 = vsyncadd %s771, 16
          $region382: #{tpu_custom_call.1} parent=291 // pred_fallthru
            _
          %s806 = sadd.s32 %s674, 3
          %s807 = sld [smem:[#allocation5 + %s806]]
          %p808 = scmp.gt.s32.totalorder %s807, 0
          %s809 = scalar_select %p808, %s807, 0
          %p810 = scmp.lt.s32.totalorder %s809, 31
          %s811 = scalar_select %p810, %s809, 31
          %s812 = sadd.s32 %s675, 3
          %s813 = scalar_lea.vmem %s2, %s811
          %s814 = scalar_lea.vmem [#allocation2], %s812
          %s815 = scalar_lea.sflag [#allocation3], %s812
          // Predicated region
          $region383: #{tpu_custom_call.1} parent=291 // pred_check
            _
          $region384: #{tpu_custom_call.1} parent=291 // pred_check_branch
            %817 = sbr.rel target = $region386
          $region385: #{tpu_custom_call.1} parent=291 // pred_region
            // Predicated region
            $region398: #{tpu_custom_call.1} parent=385 // pred_check
              _
            $region399: #{tpu_custom_call.1} parent=385 // pred_check_branch
              %833 = sbr.rel (0) target = $region401
            $region400: #{tpu_custom_call.1} parent=385 // pred_region
              %s835 = ssub.s32 2, 1
              loop: start=0, step=1, limit=1
              $region402: #{tpu_custom_call.1} parent=400 // loop_pre_header
                _
              $region403: #{tpu_custom_call.1} parent=400 // loop_header
                %s837 = sphi 0, %s841
                %p838 = scmp.ge.s32.totalorder %s837, 1
                %s842 = sphi %s813, %s813
                %s843 = sphi %s814, %s814
              $region404: #{tpu_custom_call.1} parent=400 // loop_header_branch
                %840 = sbr.rel (%p838) target = $region408
              $region405: #{tpu_custom_call.1} parent=400 // loop_body
                %v844 = vld [vmem:[%s842] sm:%s835]
                %845 = vst [vmem:[%s843] sm:%s835] %v844
              $region406: #{tpu_custom_call.1} parent=400 // loop_footer
                %s841 = sadd.s32 1, %s837
              $region407: #{tpu_custom_call.1} parent=400 // loop_footer_branch
                %836 = sbr.rel target = $region403
              $region408: #{tpu_custom_call.1} parent=400 // loop_exit
                _
            $region401: #{tpu_custom_call.1} parent=385 // pred_fallthru
              _
          $region386: #{tpu_custom_call.1} parent=291 // pred_fallthru
            _
          // Predicated region
          $region387: #{tpu_custom_call.1} parent=291 // pred_check
            _
          $region388: #{tpu_custom_call.1} parent=291 // pred_check_branch
            %819 = sbr.rel (0) target = $region390
          $region389: #{tpu_custom_call.1} parent=291 // pred_region
            %s821 = ssub.s32 2, 1
            loop: start=0, step=1, limit=1
            $region391: #{tpu_custom_call.1} parent=389 // loop_pre_header
              _
            $region392: #{tpu_custom_call.1} parent=389 // loop_header
              %s823 = sphi 0, %s827
              %p824 = scmp.ge.s32.totalorder %s823, 1
              %s828 = sphi %s813, %s813
              %s829 = sphi %s814, %s814
            $region393: #{tpu_custom_call.1} parent=389 // loop_header_branch
              %826 = sbr.rel (%p824) target = $region397
            $region394: #{tpu_custom_call.1} parent=389 // loop_body
              %v830 = vld [vmem:[%s828] sm:%s821]
              %831 = vst [vmem:[%s829] sm:%s821] %v830
            $region395: #{tpu_custom_call.1} parent=389 // loop_footer
              %s827 = sadd.s32 1, %s823
            $region396: #{tpu_custom_call.1} parent=389 // loop_footer_branch
              %822 = sbr.rel target = $region392
            $region397: #{tpu_custom_call.1} parent=389 // loop_exit
              _
          $region390: #{tpu_custom_call.1} parent=291 // pred_fallthru
            _
          // Predicated region
          $region409: #{tpu_custom_call.1} parent=291 // pred_check
            _
          $region410: #{tpu_custom_call.1} parent=291 // pred_check_branch
            %848 = sbr.rel (0) target = $region412
          $region411: #{tpu_custom_call.1} parent=291 // pred_region
            %849 = vsyncadd %s815, 16
          $region412: #{tpu_custom_call.1} parent=291 // pred_fallthru
            _
          %s850 = sadd.s32 %s674, 4
          %s851 = sld [smem:[#allocation5 + %s850]]
          %p852 = scmp.gt.s32.totalorder %s851, 0
          %s853 = scalar_select %p852, %s851, 0
          %p854 = scmp.lt.s32.totalorder %s853, 31
          %s855 = scalar_select %p854, %s853, 31
          %s856 = sadd.s32 %s675, 4
          %s857 = scalar_lea.vmem %s2, %s855
          %s858 = scalar_lea.vmem [#allocation2], %s856
          %s859 = scalar_lea.sflag [#allocation3], %s856
          // Predicated region
          $region413: #{tpu_custom_call.1} parent=291 // pred_check
            _
          $region414: #{tpu_custom_call.1} parent=291 // pred_check_branch
            %861 = sbr.rel target = $region416
          $region415: #{tpu_custom_call.1} parent=291 // pred_region
            // Predicated region
            $region428: #{tpu_custom_call.1} parent=415 // pred_check
              _
            $region429: #{tpu_custom_call.1} parent=415 // pred_check_branch
              %877 = sbr.rel (0) target = $region431
            $region430: #{tpu_custom_call.1} parent=415 // pred_region
              %s879 = ssub.s32 2, 1
              loop: start=0, step=1, limit=1
              $region432: #{tpu_custom_call.1} parent=430 // loop_pre_header
                _
              $region433: #{tpu_custom_call.1} parent=430 // loop_header
                %s881 = sphi 0, %s885
                %p882 = scmp.ge.s32.totalorder %s881, 1
                %s886 = sphi %s857, %s857
                %s887 = sphi %s858, %s858
              $region434: #{tpu_custom_call.1} parent=430 // loop_header_branch
                %884 = sbr.rel (%p882) target = $region438
              $region435: #{tpu_custom_call.1} parent=430 // loop_body
                %v888 = vld [vmem:[%s886] sm:%s879]
                %889 = vst [vmem:[%s887] sm:%s879] %v888
              $region436: #{tpu_custom_call.1} parent=430 // loop_footer
                %s885 = sadd.s32 1, %s881
              $region437: #{tpu_custom_call.1} parent=430 // loop_footer_branch
                %880 = sbr.rel target = $region433
              $region438: #{tpu_custom_call.1} parent=430 // loop_exit
                _
            $region431: #{tpu_custom_call.1} parent=415 // pred_fallthru
              _
          $region416: #{tpu_custom_call.1} parent=291 // pred_fallthru
            _
          // Predicated region
          $region417: #{tpu_custom_call.1} parent=291 // pred_check
            _
          $region418: #{tpu_custom_call.1} parent=291 // pred_check_branch
            %863 = sbr.rel (0) target = $region420
          $region419: #{tpu_custom_call.1} parent=291 // pred_region
            %s865 = ssub.s32 2, 1
            loop: start=0, step=1, limit=1
            $region421: #{tpu_custom_call.1} parent=419 // loop_pre_header
              _
            $region422: #{tpu_custom_call.1} parent=419 // loop_header
              %s867 = sphi 0, %s871
              %p868 = scmp.ge.s32.totalorder %s867, 1
              %s872 = sphi %s857, %s857
              %s873 = sphi %s858, %s858
            $region423: #{tpu_custom_call.1} parent=419 // loop_header_branch
              %870 = sbr.rel (%p868) target = $region427
            $region424: #{tpu_custom_call.1} parent=419 // loop_body
              %v874 = vld [vmem:[%s872] sm:%s865]
              %875 = vst [vmem:[%s873] sm:%s865] %v874
            $region425: #{tpu_custom_call.1} parent=419 // loop_footer
              %s871 = sadd.s32 1, %s867
            $region426: #{tpu_custom_call.1} parent=419 // loop_footer_branch
              %866 = sbr.rel target = $region422
            $region427: #{tpu_custom_call.1} parent=419 // loop_exit
              _
          $region420: #{tpu_custom_call.1} parent=291 // pred_fallthru
            _
          // Predicated region
          $region439: #{tpu_custom_call.1} parent=291 // pred_check
            _
          $region440: #{tpu_custom_call.1} parent=291 // pred_check_branch
            %892 = sbr.rel (0) target = $region442
          $region441: #{tpu_custom_call.1} parent=291 // pred_region
            %893 = vsyncadd %s859, 16
          $region442: #{tpu_custom_call.1} parent=291 // pred_fallthru
            _
          %s894 = sadd.s32 %s674, 5
          %s895 = sld [smem:[#allocation5 + %s894]]
          %p896 = scmp.gt.s32.totalorder %s895, 0
          %s897 = scalar_select %p896, %s895, 0
          %p898 = scmp.lt.s32.totalorder %s897, 31
          %s899 = scalar_select %p898, %s897, 31
          %s900 = sadd.s32 %s675, 5
          %s901 = scalar_lea.vmem %s2, %s899
          %s902 = scalar_lea.vmem [#allocation2], %s900
          %s903 = scalar_lea.sflag [#allocation3], %s900
          // Predicated region
          $region443: #{tpu_custom_call.1} parent=291 // pred_check
            _
          $region444: #{tpu_custom_call.1} parent=291 // pred_check_branch
            %905 = sbr.rel target = $region446
          $region445: #{tpu_custom_call.1} parent=291 // pred_region
            // Predicated region
            $region458: #{tpu_custom_call.1} parent=445 // pred_check
              _
            $region459: #{tpu_custom_call.1} parent=445 // pred_check_branch
              %921 = sbr.rel (0) target = $region461
            $region460: #{tpu_custom_call.1} parent=445 // pred_region
              %s923 = ssub.s32 2, 1
              loop: start=0, step=1, limit=1
              $region462: #{tpu_custom_call.1} parent=460 // loop_pre_header
                _
              $region463: #{tpu_custom_call.1} parent=460 // loop_header
                %s925 = sphi 0, %s929
                %p926 = scmp.ge.s32.totalorder %s925, 1
                %s930 = sphi %s901, %s901
                %s931 = sphi %s902, %s902
              $region464: #{tpu_custom_call.1} parent=460 // loop_header_branch
                %928 = sbr.rel (%p926) target = $region468
              $region465: #{tpu_custom_call.1} parent=460 // loop_body
                %v932 = vld [vmem:[%s930] sm:%s923]
                %933 = vst [vmem:[%s931] sm:%s923] %v932
              $region466: #{tpu_custom_call.1} parent=460 // loop_footer
                %s929 = sadd.s32 1, %s925
              $region467: #{tpu_custom_call.1} parent=460 // loop_footer_branch
                %924 = sbr.rel target = $region463
              $region468: #{tpu_custom_call.1} parent=460 // loop_exit
                _
            $region461: #{tpu_custom_call.1} parent=445 // pred_fallthru
              _
          $region446: #{tpu_custom_call.1} parent=291 // pred_fallthru
            _
          // Predicated region
          $region447: #{tpu_custom_call.1} parent=291 // pred_check
            _
          $region448: #{tpu_custom_call.1} parent=291 // pred_check_branch
            %907 = sbr.rel (0) target = $region450
          $region449: #{tpu_custom_call.1} parent=291 // pred_region
            %s909 = ssub.s32 2, 1
            loop: start=0, step=1, limit=1
            $region451: #{tpu_custom_call.1} parent=449 // loop_pre_header
              _
            $region452: #{tpu_custom_call.1} parent=449 // loop_header
              %s911 = sphi 0, %s915
              %p912 = scmp.ge.s32.totalorder %s911, 1
              %s916 = sphi %s901, %s901
              %s917 = sphi %s902, %s902
            $region453: #{tpu_custom_call.1} parent=449 // loop_header_branch
              %914 = sbr.rel (%p912) target = $region457
            $region454: #{tpu_custom_call.1} parent=449 // loop_body
              %v918 = vld [vmem:[%s916] sm:%s909]
              %919 = vst [vmem:[%s917] sm:%s909] %v918
            $region455: #{tpu_custom_call.1} parent=449 // loop_footer
              %s915 = sadd.s32 1, %s911
            $region456: #{tpu_custom_call.1} parent=449 // loop_footer_branch
              %910 = sbr.rel target = $region452
            $region457: #{tpu_custom_call.1} parent=449 // loop_exit
              _
          $region450: #{tpu_custom_call.1} parent=291 // pred_fallthru
            _
          // Predicated region
          $region469: #{tpu_custom_call.1} parent=291 // pred_check
            _
          $region470: #{tpu_custom_call.1} parent=291 // pred_check_branch
            %936 = sbr.rel (0) target = $region472
          $region471: #{tpu_custom_call.1} parent=291 // pred_region
            %937 = vsyncadd %s903, 16
          $region472: #{tpu_custom_call.1} parent=291 // pred_fallthru
            _
          %s938 = sadd.s32 %s674, 6
          %s939 = sld [smem:[#allocation5 + %s938]]
          %p940 = scmp.gt.s32.totalorder %s939, 0
          %s941 = scalar_select %p940, %s939, 0
          %p942 = scmp.lt.s32.totalorder %s941, 31
          %s943 = scalar_select %p942, %s941, 31
          %s944 = sadd.s32 %s675, 6
          %s945 = scalar_lea.vmem %s2, %s943
          %s946 = scalar_lea.vmem [#allocation2], %s944
          %s947 = scalar_lea.sflag [#allocation3], %s944
          // Predicated region
          $region473: #{tpu_custom_call.1} parent=291 // pred_check
            _
          $region474: #{tpu_custom_call.1} parent=291 // pred_check_branch
            %949 = sbr.rel target = $region476
          $region475: #{tpu_custom_call.1} parent=291 // pred_region
            // Predicated region
            $region488: #{tpu_custom_call.1} parent=475 // pred_check
              _
            $region489: #{tpu_custom_call.1} parent=475 // pred_check_branch
              %965 = sbr.rel (0) target = $region491
            $region490: #{tpu_custom_call.1} parent=475 // pred_region
              %s967 = ssub.s32 2, 1
              loop: start=0, step=1, limit=1
              $region492: #{tpu_custom_call.1} parent=490 // loop_pre_header
                _
              $region493: #{tpu_custom_call.1} parent=490 // loop_header
                %s969 = sphi 0, %s973
                %p970 = scmp.ge.s32.totalorder %s969, 1
                %s974 = sphi %s945, %s945
                %s975 = sphi %s946, %s946
              $region494: #{tpu_custom_call.1} parent=490 // loop_header_branch
                %972 = sbr.rel (%p970) target = $region498
              $region495: #{tpu_custom_call.1} parent=490 // loop_body
                %v976 = vld [vmem:[%s974] sm:%s967]
                %977 = vst [vmem:[%s975] sm:%s967] %v976
              $region496: #{tpu_custom_call.1} parent=490 // loop_footer
                %s973 = sadd.s32 1, %s969
              $region497: #{tpu_custom_call.1} parent=490 // loop_footer_branch
                %968 = sbr.rel target = $region493
              $region498: #{tpu_custom_call.1} parent=490 // loop_exit
                _
            $region491: #{tpu_custom_call.1} parent=475 // pred_fallthru
              _
          $region476: #{tpu_custom_call.1} parent=291 // pred_fallthru
            _
          // Predicated region
          $region477: #{tpu_custom_call.1} parent=291 // pred_check
            _
          $region478: #{tpu_custom_call.1} parent=291 // pred_check_branch
            %951 = sbr.rel (0) target = $region480
          $region479: #{tpu_custom_call.1} parent=291 // pred_region
            %s953 = ssub.s32 2, 1
            loop: start=0, step=1, limit=1
            $region481: #{tpu_custom_call.1} parent=479 // loop_pre_header
              _
            $region482: #{tpu_custom_call.1} parent=479 // loop_header
              %s955 = sphi 0, %s959
              %p956 = scmp.ge.s32.totalorder %s955, 1
              %s960 = sphi %s945, %s945
              %s961 = sphi %s946, %s946
            $region483: #{tpu_custom_call.1} parent=479 // loop_header_branch
              %958 = sbr.rel (%p956) target = $region487
            $region484: #{tpu_custom_call.1} parent=479 // loop_body
              %v962 = vld [vmem:[%s960] sm:%s953]
              %963 = vst [vmem:[%s961] sm:%s953] %v962
            $region485: #{tpu_custom_call.1} parent=479 // loop_footer
              %s959 = sadd.s32 1, %s955
            $region486: #{tpu_custom_call.1} parent=479 // loop_footer_branch
              %954 = sbr.rel target = $region482
            $region487: #{tpu_custom_call.1} parent=479 // loop_exit
              _
          $region480: #{tpu_custom_call.1} parent=291 // pred_fallthru
            _
          // Predicated region
          $region499: #{tpu_custom_call.1} parent=291 // pred_check
            _
          $region500: #{tpu_custom_call.1} parent=291 // pred_check_branch
            %980 = sbr.rel (0) target = $region502
          $region501: #{tpu_custom_call.1} parent=291 // pred_region
            %981 = vsyncadd %s947, 16
          $region502: #{tpu_custom_call.1} parent=291 // pred_fallthru
            _
          %s982 = sadd.s32 %s674, 7
          %s983 = sld [smem:[#allocation5 + %s982]]
          %p984 = scmp.gt.s32.totalorder %s983, 0
          %s985 = scalar_select %p984, %s983, 0
          %p986 = scmp.lt.s32.totalorder %s985, 31
          %s987 = scalar_select %p986, %s985, 31
          %s988 = sadd.s32 %s675, 7
          %s989 = scalar_lea.vmem %s2, %s987
          %s990 = scalar_lea.vmem [#allocation2], %s988
          %s991 = scalar_lea.sflag [#allocation3], %s988
          // Predicated region
          $region503: #{tpu_custom_call.1} parent=291 // pred_check
            _
          $region504: #{tpu_custom_call.1} parent=291 // pred_check_branch
            %993 = sbr.rel target = $region506
          $region505: #{tpu_custom_call.1} parent=291 // pred_region
            // Predicated region
            $region518: #{tpu_custom_call.1} parent=505 // pred_check
              _
            $region519: #{tpu_custom_call.1} parent=505 // pred_check_branch
              %1009 = sbr.rel (0) target = $region521
            $region520: #{tpu_custom_call.1} parent=505 // pred_region
              %s1011 = ssub.s32 2, 1
              loop: start=0, step=1, limit=1
              $region522: #{tpu_custom_call.1} parent=520 // loop_pre_header
                _
              $region523: #{tpu_custom_call.1} parent=520 // loop_header
                %s1013 = sphi 0, %s1017
                %p1014 = scmp.ge.s32.totalorder %s1013, 1
                %s1018 = sphi %s989, %s989
                %s1019 = sphi %s990, %s990
              $region524: #{tpu_custom_call.1} parent=520 // loop_header_branch
                %1016 = sbr.rel (%p1014) target = $region528
              $region525: #{tpu_custom_call.1} parent=520 // loop_body
                %v1020 = vld [vmem:[%s1018] sm:%s1011]
                %1021 = vst [vmem:[%s1019] sm:%s1011] %v1020
              $region526: #{tpu_custom_call.1} parent=520 // loop_footer
                %s1017 = sadd.s32 1, %s1013
              $region527: #{tpu_custom_call.1} parent=520 // loop_footer_branch
                %1012 = sbr.rel target = $region523
              $region528: #{tpu_custom_call.1} parent=520 // loop_exit
                _
            $region521: #{tpu_custom_call.1} parent=505 // pred_fallthru
              _
          $region506: #{tpu_custom_call.1} parent=291 // pred_fallthru
            _
          // Predicated region
          $region507: #{tpu_custom_call.1} parent=291 // pred_check
            _
          $region508: #{tpu_custom_call.1} parent=291 // pred_check_branch
            %995 = sbr.rel (0) target = $region510
          $region509: #{tpu_custom_call.1} parent=291 // pred_region
            %s997 = ssub.s32 2, 1
            loop: start=0, step=1, limit=1
            $region511: #{tpu_custom_call.1} parent=509 // loop_pre_header
              _
            $region512: #{tpu_custom_call.1} parent=509 // loop_header
              %s999 = sphi 0, %s1003
              %p1000 = scmp.ge.s32.totalorder %s999, 1
              %s1004 = sphi %s989, %s989
              %s1005 = sphi %s990, %s990
            $region513: #{tpu_custom_call.1} parent=509 // loop_header_branch
              %1002 = sbr.rel (%p1000) target = $region517
            $region514: #{tpu_custom_call.1} parent=509 // loop_body
              %v1006 = vld [vmem:[%s1004] sm:%s997]
              %1007 = vst [vmem:[%s1005] sm:%s997] %v1006
            $region515: #{tpu_custom_call.1} parent=509 // loop_footer
              %s1003 = sadd.s32 1, %s999
            $region516: #{tpu_custom_call.1} parent=509 // loop_footer_branch
              %998 = sbr.rel target = $region512
            $region517: #{tpu_custom_call.1} parent=509 // loop_exit
              _
          $region510: #{tpu_custom_call.1} parent=291 // pred_fallthru
            _
          // Predicated region
          $region529: #{tpu_custom_call.1} parent=291 // pred_check
            _
          $region530: #{tpu_custom_call.1} parent=291 // pred_check_branch
            %1024 = sbr.rel (0) target = $region532
          $region531: #{tpu_custom_call.1} parent=291 // pred_region
            %1025 = vsyncadd %s991, 16
          $region532: #{tpu_custom_call.1} parent=291 // pred_fallthru
            _
        $region292: #{tpu_custom_call.1} parent=39 // pred_fallthru
          _
        %v1026 = vld [vmem:[%s294] sm:$0xff]
        %v1027 = vld [vmem:[%s4] sm:$0x3]
        %v1028 = vld [vmem:[%s255] sm:$0xff]
        %vm1029 = vcmp.eq.s32.totalorder %v1026, 0
        %v1030 = vsel %vm1029, 1.0, 0.0
        %1032 = vset.pattern.permute.xlu0 0
        %1033 = vperm.xlu0 %1032, %v1030
        %v1034 = vpop.permute.xlu0 %1033
        %v1036 = vperm.slane %v1027, 0
        %v1037 = vmul.f32 %v1034, %v1036
        %v1038 = vadd.f32 %v1028, %v1037
        %vm1039 = vcmp.eq.s32.totalorder %v1026, 1
        %v1040 = vsel %vm1039, 1.0, 0.0
        %1042 = vset.pattern.permute.xlu0 0
        %1043 = vperm.xlu0 %1042, %v1040
        %v1044 = vpop.permute.xlu0 %1043
        %v1046 = vperm.slane %v1027, 1
        %v1047 = vmul.f32 %v1044, %v1046
        %v1048 = vadd.f32 %v1038, %v1047
        %s1049 = smul.u32 %s308, 8
        %s1050 = scalar_lea.sflag [#allocation3], %s1049
        %s1051 = smul.u32 1, 1
        %s1052 = sshll.u32 %s1051, 4
        %1053 = dma.done %s1050, %s1052
        %s1054 = sadd.s32 %s1049, 1
        %s1055 = scalar_lea.sflag [#allocation3], %s1054
        %s1056 = sshll.u32 %s1051, 4
        %1057 = dma.done %s1055, %s1056
        %s1058 = sadd.s32 %s1049, 2
        %s1059 = scalar_lea.sflag [#allocation3], %s1058
        %s1060 = sshll.u32 %s1051, 4
        %1061 = dma.done %s1059, %s1060
        %s1062 = sadd.s32 %s1049, 3
        %s1063 = scalar_lea.sflag [#allocation3], %s1062
        %s1064 = sshll.u32 %s1051, 4
        %1065 = dma.done %s1063, %s1064
        %s1066 = sadd.s32 %s1049, 4
        %s1067 = scalar_lea.sflag [#allocation3], %s1066
        %s1068 = sshll.u32 %s1051, 4
        %1069 = dma.done %s1067, %s1068
        %s1070 = sadd.s32 %s1049, 5
        %s1071 = scalar_lea.sflag [#allocation3], %s1070
        %s1072 = sshll.u32 %s1051, 4
        %1073 = dma.done %s1071, %s1072
        %s1074 = sadd.s32 %s1049, 6
        %s1075 = scalar_lea.sflag [#allocation3], %s1074
        %s1076 = sshll.u32 %s1051, 4
        %1077 = dma.done %s1075, %s1076
        %s1078 = sadd.s32 %s1049, 7
        %s1079 = scalar_lea.sflag [#allocation3], %s1078
        %s1080 = sshll.u32 %s1051, 4
        %1081 = dma.done %s1079, %s1080
        %s1082 = scalar_lea.vmem [#allocation2], %s1049
        %v1083 = vld [vmem:[%s1082] sm:$0xff]
        %v1084 = vadd.f32 %v1048, %v1083
        %vm1085 = vcmask 261120
        %v1086 = vsel %vm1085, %v1084, 0.0
        %1087 = vadd.xlane.f32.xlu0 %v1086
        %v1088 = vpop.xlane.xlu0 %1087
        %v1089 = vrcp.pop 32.0
        %v1090 = vmul.f32 32.0, %v1089
        %v1091 = vsub.f32 1.0, %v1090
        %v1092 = vmul.f32 %v1089, %v1091
        %v1093 = vadd.f32 %v1089, %v1092
        %vm1094 = vweird.f32 %v1089
        %v1095 = vsel %vm1094, %v1089, %v1093
        %v1096 = vmul.f32 %v1088, %v1095
        %v1097 = vsub.f32 %v1084, %v1096
        %v1098 = vmul.f32 %v1097, %v1097
        %v1099 = vsel %vm1085, %v1098, 0.0
        %1100 = vadd.xlane.f32.xlu0 %v1099
        %v1101 = vpop.xlane.xlu0 %1100
        %v1102 = vmul.f32 %v1101, %v1095
        %v1103 = vadd.f32 %v1102, 1e-12
        %v1104 = vrsqrt.pop %v1103
        %v1105 = vmul.f32 %v1104, %v1103
        %v1106 = vmul.f32 %v1105, %v1104
        %v1107 = vmul.f32 0.5, %v1106
        %v1108 = vsub.f32 1.5, %v1107
        %v1109 = vmul.f32 %v1104, %v1108
        %vm1110 = vweird.f32 %v1103
        %vm1111 = vweird.f32 %v1104
        %vm1112 = vmor %vm1110, %vm1111
        %v1113 = vsel %vm1112, %v1104, %v1109
        %v1114 = vmul.f32 %v1097, %v1113
        %v1115 = vld [vmem:[%s5] sm:$0x1]
        %v1117 = vperm.slane %v1115, 0
        %v1119 = vmul.f32 %v1114, %v1117
        %v1120 = vld [vmem:[%s6] sm:$0x1]
        %v1122 = vperm.slane %v1120, 0
        %v1124 = vadd.f32 %v1119, %v1122
        %1125 = vst.msk [vmem:[%s288] sm:$0xff] %vm1085, %v1124
        %s1126 = sand.u32 %s173, 1
        %s1127 = scalar_lea.sflag [#allocation8], %s1126
        %s1128 = sand.u32 %s173, 1
        %s1129 = smul.addr %s1128, 8
        %s1130 = scalar_lea.vmem [#allocation9], %s1129
        // Predicated region
        $region533: #{tpu_custom_call.1} parent=39 // pred_check
          %p1131 = pneg %p183
        $region534: #{tpu_custom_call.1} parent=39 // pred_check_branch
          %1133 = sbr.rel (%p1131) target = $region536
        $region535: #{tpu_custom_call.1} parent=39 // pred_region
          %1135 = vsyncadd %s1127, 0
          %s1136 = smul.addr %s36, 2
          %s1137 = sadd.s32 %s37, %s1136
          %s1138 = smul.addr %s1137, 8
          %s1139 = scalar_lea.hbm %s7, %s1138
          %s1141 = sshll.u32 %s1130, 4
          %s1142 = int_to_ptr.vmem [resolvable:$true] %s1141
          %s1143 = sshll.u32 %s1139, 4
          %s1144 = int_to_ptr.hbm [resolvable:$true] %s1143
          %1146 = dma.vmem_to_hbm [thread:$0]  %s1142, 128, %s1144, %s1127
        $region536: #{tpu_custom_call.1} parent=39 // pred_fallthru
          _
      $region40: #{tpu_custom_call.1} parent=5 // pred_fallthru
        _
      %p1147 = scmp.le.s32.totalorder 2, %s27
      // Predicated region
      $region537: #{tpu_custom_call.1} parent=5 // pred_check
        %p1148 = pneg %p1147
      $region538: #{tpu_custom_call.1} parent=5 // pred_check_branch
        %1150 = sbr.rel (%p1148) target = $region540
      $region539: #{tpu_custom_call.1} parent=5 // pred_region
        %s1151 = ssub.s32 %s27, 2
        // Predicated region
        $region541: #{tpu_custom_call.1} parent=539 // pred_check
          %p1152 = pneg %p189
        $region542: #{tpu_custom_call.1} parent=539 // pred_check_branch
          %1154 = sbr.rel (%p1152) target = $region544
        $region543: #{tpu_custom_call.1} parent=539 // pred_region
          %s1155 = sand.u32 %s174, 1
          %s1156 = scalar_lea.sflag [#allocation8], %s1155
          %s1157 = sand.u32 %s174, 1
          %s1158 = smul.addr %s1157, 8
          %s1159 = scalar_lea.vmem [#allocation9], %s1158
          %1161 = dma.done %s1156, 128
        $region544: #{tpu_custom_call.1} parent=539 // pred_fallthru
          _
      $region540: #{tpu_custom_call.1} parent=5 // pred_fallthru
        _
    $region6: #{tpu_custom_call.1} parent=1 // loop_footer
      %s31 = sadd.s32 1, %s27
    $region7: #{tpu_custom_call.1} parent=1 // loop_footer_branch
      %26 = sbr.rel target = $region3
    $region8: #{tpu_custom_call.1} parent=1 // loop_exit
      _
    %1162 = vsyncpa [#allocation7], 1
    %s1163 = scalar_lea.sflag [#allocation7], 1
    %1164 = vsyncpa %s1163, 1
    %1165 = vsyncpa [#allocation8], 1
    %s1166 = scalar_lea.sflag [#allocation8], 1
    %1167 = vsyncpa %s1166, 1
  %1168 = vsyncmov [#allocation3]
  %s1169 = vpop.sfrf %1168
  %p1170 = scmp.eq.s32.totalorder %s1169, 0
  %p1171 = pneg %p1170
  %1173 = shalt.err (%p1171)
  %s1174 = scalar_lea.sflag [#allocation3], 1
  %1175 = vsyncmov %s1174
  %s1176 = vpop.sfrf %1175
  %p1177 = scmp.eq.s32.totalorder %s1176, 0
  %p1178 = pneg %p1177
  %1180 = shalt.err (%p1178)
  %s1181 = scalar_lea.sflag [#allocation3], 2
  %1182 = vsyncmov %s1181
  %s1183 = vpop.sfrf %1182
  %p1184 = scmp.eq.s32.totalorder %s1183, 0
  %p1185 = pneg %p1184
  %1187 = shalt.err (%p1185)
  %s1188 = scalar_lea.sflag [#allocation3], 3
  %1189 = vsyncmov %s1188
  %s1190 = vpop.sfrf %1189
  %p1191 = scmp.eq.s32.totalorder %s1190, 0
  %p1192 = pneg %p1191
  %1194 = shalt.err (%p1192)
  %s1195 = scalar_lea.sflag [#allocation3], 4
  %1196 = vsyncmov %s1195
  %s1197 = vpop.sfrf %1196
  %p1198 = scmp.eq.s32.totalorder %s1197, 0
  %p1199 = pneg %p1198
  %1201 = shalt.err (%p1199)
  %s1202 = scalar_lea.sflag [#allocation3], 5
  %1203 = vsyncmov %s1202
  %s1204 = vpop.sfrf %1203
  %p1205 = scmp.eq.s32.totalorder %s1204, 0
  %p1206 = pneg %p1205
  %1208 = shalt.err (%p1206)
  %s1209 = scalar_lea.sflag [#allocation3], 6
  %1210 = vsyncmov %s1209
  %s1211 = vpop.sfrf %1210
  %p1212 = scmp.eq.s32.totalorder %s1211, 0
  %p1213 = pneg %p1212
  %1215 = shalt.err (%p1213)
  %s1216 = scalar_lea.sflag [#allocation3], 7
  %1217 = vsyncmov %s1216
  %s1218 = vpop.sfrf %1217
  %p1219 = scmp.eq.s32.totalorder %s1218, 0
  %p1220 = pneg %p1219
  %1222 = shalt.err (%p1220)
  %s1223 = scalar_lea.sflag [#allocation3], 8
  %1224 = vsyncmov %s1223
  %s1225 = vpop.sfrf %1224
  %p1226 = scmp.eq.s32.totalorder %s1225, 0
  %p1227 = pneg %p1226
  %1229 = shalt.err (%p1227)
  %s1230 = scalar_lea.sflag [#allocation3], 9
  %1231 = vsyncmov %s1230
  %s1232 = vpop.sfrf %1231
  %p1233 = scmp.eq.s32.totalorder %s1232, 0
  %p1234 = pneg %p1233
  %1236 = shalt.err (%p1234)
  %s1237 = scalar_lea.sflag [#allocation3], 10
  %1238 = vsyncmov %s1237
  %s1239 = vpop.sfrf %1238
  %p1240 = scmp.eq.s32.totalorder %s1239, 0
  %p1241 = pneg %p1240
  %1243 = shalt.err (%p1241)
  %s1244 = scalar_lea.sflag [#allocation3], 11
  %1245 = vsyncmov %s1244
  %s1246 = vpop.sfrf %1245
  %p1247 = scmp.eq.s32.totalorder %s1246, 0
  %p1248 = pneg %p1247
  %1250 = shalt.err (%p1248)
  %s1251 = scalar_lea.sflag [#allocation3], 12
  %1252 = vsyncmov %s1251
  %s1253 = vpop.sfrf %1252
  %p1254 = scmp.eq.s32.totalorder %s1253, 0
  %p1255 = pneg %p1254
  %1257 = shalt.err (%p1255)
  %s1258 = scalar_lea.sflag [#allocation3], 13
  %1259 = vsyncmov %s1258
  %s1260 = vpop.sfrf %1259
  %p1261 = scmp.eq.s32.totalorder %s1260, 0
  %p1262 = pneg %p1261
  %1264 = shalt.err (%p1262)
  %s1265 = scalar_lea.sflag [#allocation3], 14
  %1266 = vsyncmov %s1265
  %s1267 = vpop.sfrf %1266
  %p1268 = scmp.eq.s32.totalorder %s1267, 0
  %p1269 = pneg %p1268
  %1271 = shalt.err (%p1269)
  %s1272 = scalar_lea.sflag [#allocation3], 15
  %1273 = vsyncmov %s1272
  %s1274 = vpop.sfrf %1273
  %p1275 = scmp.eq.s32.totalorder %s1274, 0
  %p1276 = pneg %p1275
  %1278 = shalt.err (%p1276)

</llo_original>
